<compile_context>
chip_gen: v6e
topology: v6e:2x2x1
jax: 0.10.0
libtpu: 0.0.40
codegen_flags: <defaults>
</compile_context>

<pallas_src>
import math
from functools import partial

import jax
import jax.numpy as jnp
from jax import lax
from jax.experimental import pallas as pl
from jax.experimental.pallas import tpu as pltpu

LN_EPS = 1e-5  # nn.LayerNorm default


# ------------------------------ helpers ---------------------------------

def _seq_tile(seq, n, target_rows=512):
    """Seq-tile size: divides seq, rows-per-tile (tile*n) is a multiple of 8
    (sublane alignment) and <= target_rows.  Prefer >=2 grid blocks so both
    TensorCores get work on megacore parts."""
    cands = [d for d in range(1, seq + 1)
             if seq % d == 0 and (d * n) % 8 == 0 and d * n <= target_rows]
    if not cands:
        # Legal only because block == full array dims; single-block grid.
        return seq
    best = max(cands)
    if best == seq:
        smaller = [d for d in cands if d < seq]
        if smaller:
            best = max(smaller)        # give the grid >=2 parallel steps
    return best


def _layernorm(x, g, b):
    mu = jnp.mean(x, axis=-1, keepdims=True)
    d = x - mu
    var = jnp.mean(d * d, axis=-1, keepdims=True)
    return d * lax.rsqrt(var + LN_EPS) * g + b


# ---------------------------- fused kernel ------------------------------

def _net_kernel(x_ref, pos_ref, ew_ref, eb_ref, hsel_ref, hexp_ref,
                wqkv_ref, bqkv_ref, wo_ref, bo_ref,
                ln1g_ref, ln1b_ref, w1_ref, b1_ref, w2_ref, b2_ref,
                ln2g_ref, ln2b_ref, o_ref, acc_ref, *, n):
    """Grid step = (seq_tile, layer).  acc_ref carries the activation in VMEM
    across the (inner, 'arbitrary') layer axis."""
    l = pl.program_id(1)
    n_layers = pl.num_programs(1)
    bf16 = jnp.bfloat16
    rows, e = acc_ref.shape
    ts = rows // n
    heads = hsel_ref.shape[1]

    # ---- layer 0: fused word embedding + positional embedding ----
    @pl.when(l == 0)
    def _():
        emb = jnp.dot(x_ref[...].astype(bf16), ew_ref[...],
                      preferred_element_type=jnp.float32) + eb_ref[...]
        emb = (emb.reshape(ts, n, e) + pos_ref[...]).reshape(rows, e)
        acc_ref[...] = emb

    act = acc_ref[...]                                          # (rows, E) f32

    # ---- fused QKV projection (attention scale pre-folded into Q) ----
    qkv = jnp.dot(act.astype(bf16), wqkv_ref[...],
                  preferred_element_type=jnp.float32) + bqkv_ref[...]
    q = qkv[:, :e].reshape(ts, n, e)                            # (ts, N, E)
    k = qkv[:, e:2 * e].reshape(ts, n, e)
    v = qkv[:, 2 * e:].reshape(ts, n, e)

    # ---- all heads at once: attention over the N axis per seq position ----
    # per-head scores: s[t,i,j,h] = sum_{c in head h} q[t,i,c] * k[t,j,c]
    prod = q[:, :, None, :] * k[:, None, :, :]                  # (ts, N, N, E)
    s = jnp.dot(prod.reshape(ts * n * n, e), hsel_ref[...],
                preferred_element_type=jnp.float32).reshape(ts, n, n, heads)
    s = s - jnp.max(s, axis=2, keepdims=True)
    p = jnp.exp(s)
    p = p * pl.reciprocal(jnp.sum(p, axis=2, keepdims=True), approx=True)
    # expand per-head probs back onto their dh lanes, then weighted sum over j
    pe = jnp.dot(p.reshape(ts * n * n, heads), hexp_ref[...],
                 preferred_element_type=jnp.float32).reshape(ts, n, n, e)
    ctx = jnp.sum(pe * v[:, None, :, :], axis=2)                # (ts, N, E)
    attn = ctx.reshape(rows, e)

    a_out = jnp.dot(attn.astype(bf16), wo_ref[...],
                    preferred_element_type=jnp.float32) + bo_ref[...]

    # ---- x1 = dropout(norm1(attention + query)); dropout = identity ----
    x1 = _layernorm(a_out + act, ln1g_ref[...], ln1b_ref[...])

    # ---- feed-forward: Linear -> ReLU -> Linear ----
    h = jnp.dot(x1.astype(bf16), w1_ref[...],
                preferred_element_type=jnp.float32) + b1_ref[...]
    h = jnp.maximum(h, 0.0)
    ff = jnp.dot(h.astype(bf16), w2_ref[...],
                 preferred_element_type=jnp.float32) + b2_ref[...]

    out = _layernorm(ff + x1, ln2g_ref[...], ln2b_ref[...])
    acc_ref[...] = out                                          # VMEM carry

    @pl.when(l == n_layers - 1)
    def _():
        o_ref[...] = out                                        # single HBM write


# ----------------------------- forward pass ------------------------------

def transformer_discriminator(x, params, heads):
    # x: (N, seq, input_dim)
    n, seq, in_dim = x.shape
    e = params["emb_w"].shape[1]
    hff = params["w1"].shape[-1]
    num_layers = params["wqkv"].shape[0]
    dh = e // heads
    ts = _seq_tile(seq, n)
    rows = seq * n

    # Attention runs over the original axis 0 (= N), so make those rows
    # contiguous: (N, S, In) -> (S, N, In) -> (S*N, In).  Done once in XLA on
    # the tiny raw input; no per-layer transposes anywhere else.
    x2d = jnp.transpose(x, (1, 0, 2)).reshape(rows, in_dim)
    pos3 = params["pos_emb"][:seq][:, None, :]                  # (S, 1, E)

    # Head selector (E, heads) / expander (heads, E) one-hot matrices.
    head_id = jnp.arange(e, dtype=jnp.int32) // dh
    hsel = (head_id[:, None] == jnp.arange(heads, dtype=jnp.int32)[None, :]
            ).astype(jnp.float32)
    hexp = hsel.T

    blk_act = pl.BlockSpec((ts * n, e), lambda si, li: (si, 0))

    def full2(d0, d1):
        return pl.BlockSpec((d0, d1), lambda si, li: (0, 0))

    def per_layer(d1, d2):
        return pl.BlockSpec((None, d1, d2), lambda si, li: (li, 0, 0))

    operands = (x2d, pos3, params["emb_w"], params["emb_b"], hsel, hexp,
                params["wqkv"], params["bqkv"], params["wo"], params["bo"],
                params["ln1_g"], params["ln1_b"], params["w1"], params["b1"],
                params["w2"], params["b2"], params["ln2_g"], params["ln2_b"])

    flops = int(2 * rows * in_dim * e
                + num_layers * (2 * rows * (3 * e * e + e * e + 2 * e * hff)
                                + 6 * rows * n * e))
    transcendentals = int(num_layers * seq * n * n * heads)
    bytes_accessed = int(sum(a.size * a.dtype.itemsize for a in operands)
                         + rows * e * 4)

    out2d = pl.pallas_call(
        partial(_net_kernel, n=n),
        out_shape=jax.ShapeDtypeStruct((rows, e), jnp.float32),
        grid=(seq // ts, num_layers),
        in_specs=[
            pl.BlockSpec((ts * n, in_dim), lambda si, li: (si, 0)),   # x
            pl.BlockSpec((ts, 1, e), lambda si, li: (si, 0, 0)),      # pos
            full2(in_dim, e),      # emb_w
            full2(1, e),           # emb_b
            full2(e, heads),       # hsel
            full2(heads, e),       # hexp
            per_layer(e, 3 * e),   # wqkv
            per_layer(1, 3 * e),   # bqkv
            per_layer(e, e),       # wo
            per_layer(1, e),       # bo
            per_layer(1, e),       # ln1_g
            per_layer(1, e),       # ln1_b
            per_layer(e, hff),     # w1
            per_layer(1, hff),     # b1
            per_layer(hff, e),     # w2
            per_layer(1, e),       # b2
            per_layer(1, e),       # ln2_g
            per_layer(1, e),       # ln2_b
        ],
        out_specs=blk_act,
        scratch_shapes=[pltpu.VMEM((ts * n, e), jnp.float32)],
        compiler_params=pltpu.CompilerParams(
            dimension_semantics=("parallel", "arbitrary")),
        cost_estimate=pl.CostEstimate(flops=flops,
                                      transcendentals=transcendentals,
                                      bytes_accessed=bytes_accessed),
    )(*operands)

    # Final 1-wide projection stays in XLA (lane dim 1 => masked stores in a
    # Pallas kernel; not worth a launch).
    logits = out2d @ params["fc_w"] + params["fc_b"]            # (S*N, 1)
    return jnp.transpose(logits.reshape(seq, n, 1), (1, 0, 2))  # (N, S, 1)


# ------------------------------ parameters ------------------------------

def init_params(key, input_dim, embed_size, num_layers, heads,
                forward_expansion, max_length):
    def dense(k, fan_in, fan_out):
        k1, k2 = jax.random.split(k)
        w = (jax.random.normal(k1, (fan_in, fan_out), jnp.float32)
             / math.sqrt(fan_in))
        b = 0.01 * jax.random.normal(k2, (1, fan_out), jnp.float32)
        return w, b

    bf16 = jnp.bfloat16   # MXU operands stored bf16; accumulation stays f32
    e = embed_size
    hidden = forward_expansion * e
    scale = 1.0 / math.sqrt(e // heads)

    keys = iter(jax.random.split(key, 3 + 4 * num_layers))
    p = {}
    w, b = dense(next(keys), input_dim, e)
    p["emb_w"], p["emb_b"] = w.astype(bf16), b
    p["pos_emb"] = 0.02 * jax.random.normal(next(keys), (max_length, e),
                                            jnp.float32)
    p["fc_w"], p["fc_b"] = dense(next(keys), e, 1)

    wqkv, bqkv, wo, bo, w1, b1, w2, b2 = ([] for _ in range(8))
    for _ in range(num_layers):
        w_, b_ = dense(next(keys), e, 3 * e)
        # fold the 1/sqrt(dh) attention scale into the Q projection (weights+bias)
        w_ = w_.at[:, :e].multiply(scale)
        b_ = b_.at[:, :e].multiply(scale)
        wqkv.append(w_.astype(bf16)); bqkv.append(b_)
        w_, b_ = dense(next(keys), e, e)
        wo.append(w_.astype(bf16)); bo.append(b_)
        w_, b_ = dense(next(keys), e, hidden)
        w1.append(w_.astype(bf16)); b1.append(b_)
        w_, b_ = dense(next(keys), hidden, e)
        w2.append(w_.astype(bf16)); b2.append(b_)

    p["wqkv"], p["bqkv"] = jnp.stack(wqkv), jnp.stack(bqkv)
    p["wo"], p["bo"] = jnp.stack(wo), jnp.stack(bo)
    p["w1"], p["b1"] = jnp.stack(w1), jnp.stack(b1)
    p["w2"], p["b2"] = jnp.stack(w2), jnp.stack(b2)
    p["ln1_g"] = jnp.ones((num_layers, 1, e), jnp.float32)
    p["ln1_b"] = jnp.zeros((num_layers, 1, e), jnp.float32)
    p["ln2_g"] = jnp.ones((num_layers, 1, e), jnp.float32)
    p["ln2_b"] = jnp.zeros((num_layers, 1, e), jnp.float32)
    return p


# --------------------------------- main ---------------------------------

if __name__ == "__main__":
    # Small config consistent with the module's constructor (E=128 keeps every
    # Pallas-stored activation lane-dense).
    N, SEQ, INPUT_DIM = 2, 8, 4
    EMBED, HEADS, LAYERS, FWD_EXP, MAX_LEN = 128, 4, 2, 2, 16

    key = jax.random.PRNGKey(0)
    k_x, k_p = jax.random.split(key)
    x = jax.random.normal(k_x, (N, SEQ, INPUT_DIM), jnp.float32)
    params = init_params(k_p, INPUT_DIM, EMBED, LAYERS, HEADS, FWD_EXP, MAX_LEN)

    fwd = jax.jit(partial(transformer_discriminator, heads=HEADS))
    out = fwd(x, params)
    jax.block_until_ready(out)
    assert out.shape == (N, SEQ, 1)
    assert bool(jnp.all(jnp.isfinite(out)))
    print("KERNEL_OK")
</pallas_src>

<mosaic_0001>
module attributes {stable_mosaic.version = 11 : i64} {
  func.func @_net_kernel(%arg0: i32, %arg1: i32, %arg2: memref<8x4xf32, #tpu.memory_space<vmem>>, %arg3: memref<4x1x128xf32, #tpu.memory_space<vmem>>, %arg4: memref<4x128xbf16, #tpu.memory_space<vmem>>, %arg5: memref<1x128xf32, #tpu.memory_space<vmem>>, %arg6: memref<128x4xf32, #tpu.memory_space<vmem>>, %arg7: memref<4x128xf32, #tpu.memory_space<vmem>>, %arg8: memref<1x128x384xbf16, #tpu.memory_space<vmem>>, %arg9: memref<1x1x384xf32, #tpu.memory_space<vmem>>, %arg10: memref<1x128x128xbf16, #tpu.memory_space<vmem>>, %arg11: memref<1x1x128xf32, #tpu.memory_space<vmem>>, %arg12: memref<1x1x128xf32, #tpu.memory_space<vmem>>, %arg13: memref<1x1x128xf32, #tpu.memory_space<vmem>>, %arg14: memref<1x128x256xbf16, #tpu.memory_space<vmem>>, %arg15: memref<1x1x256xf32, #tpu.memory_space<vmem>>, %arg16: memref<1x256x128xbf16, #tpu.memory_space<vmem>>, %arg17: memref<1x1x128xf32, #tpu.memory_space<vmem>>, %arg18: memref<1x1x128xf32, #tpu.memory_space<vmem>>, %arg19: memref<1x1x128xf32, #tpu.memory_space<vmem>>, %arg20: memref<8x128xf32, #tpu.memory_space<vmem>>, %arg21: memref<8x128xf32, #tpu.memory_space<vmem>>) attributes {dimension_semantics = [#tpu.dimension_semantics<parallel>, #tpu.dimension_semantics<arbitrary>], iteration_bounds = array<i64: 2, 2>, scalar_prefetch = 0 : i64, scratch_operands = 1 : i64, tpu.core_type = #tpu.core_type<tc>, window_params = [{transform_indices = @transform_0, window_bounds = array<i64: 8, 4>}, {transform_indices = @transform_1, window_bounds = array<i64: 4, 1, 128>}, {pipeline_mode = #tpu.pipeline_mode<synchronous>, transform_indices = @transform_2, window_bounds = array<i64: 4, 128>}, {pipeline_mode = #tpu.pipeline_mode<synchronous>, transform_indices = @transform_3, window_bounds = array<i64: 1, 128>}, {pipeline_mode = #tpu.pipeline_mode<synchronous>, transform_indices = @transform_4, window_bounds = array<i64: 128, 4>}, {pipeline_mode = #tpu.pipeline_mode<synchronous>, transform_indices = @transform_5, window_bounds = array<i64: 4, 128>}, {transform_indices = @transform_6, window_bounds = array<i64: 1, 128, 384>}, {transform_indices = @transform_7, window_bounds = array<i64: 1, 1, 384>}, {transform_indices = @transform_8, window_bounds = array<i64: 1, 128, 128>}, {transform_indices = @transform_9, window_bounds = array<i64: 1, 1, 128>}, {transform_indices = @transform_10, window_bounds = array<i64: 1, 1, 128>}, {transform_indices = @transform_11, window_bounds = array<i64: 1, 1, 128>}, {transform_indices = @transform_12, window_bounds = array<i64: 1, 128, 256>}, {transform_indices = @transform_13, window_bounds = array<i64: 1, 1, 256>}, {transform_indices = @transform_14, window_bounds = array<i64: 1, 256, 128>}, {transform_indices = @transform_15, window_bounds = array<i64: 1, 1, 128>}, {transform_indices = @transform_16, window_bounds = array<i64: 1, 1, 128>}, {transform_indices = @transform_17, window_bounds = array<i64: 1, 1, 128>}, {transform_indices = @transform_18, window_bounds = array<i64: 8, 128>}]} {
    %c0_i32 = arith.constant 0 : i32
    %0 = arith.cmpi eq, %arg1, %c0_i32 : i32
    %1 = arith.extui %0 : i1 to i32
    %c0_i32_0 = arith.constant 0 : i32
    %2 = arith.cmpi ne, %1, %c0_i32_0 : i32
    scf.if %2 {
      %c0_64 = arith.constant 0 : index
      %c0_65 = arith.constant 0 : index
      %126 = vector.load %arg2[%c0_64, %c0_65] : memref<8x4xf32, #tpu.memory_space<vmem>>, vector<8x4xf32>
      %127 = arith.truncf %126 : vector<8x4xf32> to vector<8x4xbf16>
      %c0_66 = arith.constant 0 : index
      %c0_67 = arith.constant 0 : index
      %128 = vector.load %arg4[%c0_66, %c0_67] : memref<4x128xbf16, #tpu.memory_space<vmem>>, vector<4x128xbf16>
      %cst_68 = arith.constant dense<0.000000e+00> : vector<8x128xf32>
      %129 = tpu.matmul %127, %128, %cst_68 {dimension_numbers = #tpu.dot_dimension_numbers<[1], [0], [0], [1], [0, 0, 1, 1], [], []>} : vector<8x4xbf16>, vector<4x128xbf16>, vector<8x128xf32> -> vector<8x128xf32>
      %c0_69 = arith.constant 0 : index
      %c0_70 = arith.constant 0 : index
      %130 = vector.load %arg5[%c0_69, %c0_70] : memref<1x128xf32, #tpu.memory_space<vmem>>, vector<1x128xf32>
      %131 = vector.broadcast %130 : vector<1x128xf32> to vector<8x128xf32>
      %132 = arith.addf %129, %131 : vector<8x128xf32>
      %133 = vector.shape_cast %132 : vector<8x128xf32> to vector<4x2x128xf32>
      %c0_71 = arith.constant 0 : index
      %c0_72 = arith.constant 0 : index
      %c0_73 = arith.constant 0 : index
      %134 = vector.load %arg3[%c0_71, %c0_72, %c0_73] : memref<4x1x128xf32, #tpu.memory_space<vmem>>, vector<4x1x128xf32>
      %135 = vector.broadcast %134 : vector<4x1x128xf32> to vector<4x2x128xf32>
      %136 = arith.addf %133, %135 : vector<4x2x128xf32>
      %137 = vector.shape_cast %136 : vector<4x2x128xf32> to vector<8x128xf32>
      %c0_74 = arith.constant 0 : index
      %c0_75 = arith.constant 0 : index
      %138 = vector.load %arg21[%c0_74, %c0_75] : memref<8x128xf32, #tpu.memory_space<vmem>>, vector<8x128xf32>
      tpu.vector_store %arg21[%c0_74, %c0_75], %137 {strides = array<i32>} : memref<8x128xf32, #tpu.memory_space<vmem>>, vector<8x128xf32>,
    } else {
    }
    %c0 = arith.constant 0 : index
    %c0_1 = arith.constant 0 : index
    %3 = vector.load %arg21[%c0, %c0_1] : memref<8x128xf32, #tpu.memory_space<vmem>>, vector<8x128xf32>
    %4 = arith.truncf %3 : vector<8x128xf32> to vector<8x128xbf16>
    %c0_2 = arith.constant 0 : index
    %c0_3 = arith.constant 0 : index
    %c0_4 = arith.constant 0 : index
    %5 = vector.load %arg8[%c0_2, %c0_3, %c0_4] : memref<1x128x384xbf16, #tpu.memory_space<vmem>>, vector<1x128x384xbf16>
    %6 = vector.shape_cast %5 : vector<1x128x384xbf16> to vector<128x384xbf16>
    %cst = arith.constant dense<0.000000e+00> : vector<8x384xf32>
    %7 = tpu.matmul %4, %6, %cst {dimension_numbers = #tpu.dot_dimension_numbers<[1], [0], [0], [1], [0, 0, 1, 1], [], []>} : vector<8x128xbf16>, vector<128x384xbf16>, vector<8x384xf32> -> vector<8x384xf32>
    %c0_5 = arith.constant 0 : index
    %c0_6 = arith.constant 0 : index
    %c0_7 = arith.constant 0 : index
    %8 = vector.load %arg9[%c0_5, %c0_6, %c0_7] : memref<1x1x384xf32, #tpu.memory_space<vmem>>, vector<1x1x384xf32>
    %9 = vector.shape_cast %8 : vector<1x1x384xf32> to vector<1x384xf32>
    %10 = vector.broadcast %9 : vector<1x384xf32> to vector<8x384xf32>
    %11 = arith.addf %7, %10 : vector<8x384xf32>
    %12 = vector.extract_strided_slice %11 {offsets = [0, 0], sizes = [8, 128], strides = [1, 1]} : vector<8x384xf32> to vector<8x128xf32>
    %13 = vector.shape_cast %12 : vector<8x128xf32> to vector<4x2x128xf32>
    %14 = vector.extract_strided_slice %11 {offsets = [0, 128], sizes = [8, 128], strides = [1, 1]} : vector<8x384xf32> to vector<8x128xf32>
    %15 = vector.shape_cast %14 : vector<8x128xf32> to vector<4x2x128xf32>
    %16 = vector.extract_strided_slice %11 {offsets = [0, 256], sizes = [8, 128], strides = [1, 1]} : vector<8x384xf32> to vector<8x128xf32>
    %17 = vector.shape_cast %16 : vector<8x128xf32> to vector<4x2x128xf32>
    %18 = vector.shape_cast %13 : vector<4x2x128xf32> to vector<4x2x1x128xf32>
    %19 = vector.shape_cast %15 : vector<4x2x128xf32> to vector<4x1x2x128xf32>
    %20 = vector.broadcast %18 : vector<4x2x1x128xf32> to vector<4x2x2x128xf32>
    %21 = vector.broadcast %19 : vector<4x1x2x128xf32> to vector<4x2x2x128xf32>
    %22 = arith.mulf %20, %21 : vector<4x2x2x128xf32>
    %23 = vector.shape_cast %22 : vector<4x2x2x128xf32> to vector<16x128xf32>
    %c0_8 = arith.constant 0 : index
    %c0_9 = arith.constant 0 : index
    %24 = vector.load %arg6[%c0_8, %c0_9] : memref<128x4xf32, #tpu.memory_space<vmem>>, vector<128x4xf32>
    %cst_10 = arith.constant dense<0.000000e+00> : vector<16x4xf32>
    %25 = tpu.matmul %23, %24, %cst_10 {dimension_numbers = #tpu.dot_dimension_numbers<[1], [0], [0], [1], [0, 0, 1, 1], [], []>} : vector<16x128xf32>, vector<128x4xf32>, vector<16x4xf32> -> vector<16x4xf32>
    %26 = vector.shape_cast %25 : vector<16x4xf32> to vector<4x2x2x4xf32>
    %cst_11 = arith.constant dense<0xFF800000> : vector<4x2x4xf32>
    %27 = vector.multi_reduction <maximumf>, %26, %cst_11 [2] : vector<4x2x2x4xf32> to vector<4x2x4xf32>
    %28 = vector.shape_cast %27 : vector<4x2x4xf32> to vector<4x2x1x4xf32>
    %29 = vector.broadcast %28 : vector<4x2x1x4xf32> to vector<4x2x2x4xf32>
    %30 = arith.subf %26, %29 : vector<4x2x2x4xf32>
    %31 = math.exp %30 : vector<4x2x2x4xf32>
    %cst_12 = arith.constant dense<0.000000e+00> : vector<4x2x4xf32>
    %32 = vector.multi_reduction <add>, %31, %cst_12 [2] : vector<4x2x2x4xf32> to vector<4x2x4xf32>
    %33 = vector.shape_cast %32 : vector<4x2x4xf32> to vector<4x2x1x4xf32>
    %34 = tpu.reciprocal %33 {approx = true} : vector<4x2x1x4xf32> -> vector<4x2x1x4xf32>
    %35 = vector.broadcast %34 : vector<4x2x1x4xf32> to vector<4x2x2x4xf32>
    %36 = arith.mulf %31, %35 : vector<4x2x2x4xf32>
    %37 = vector.shape_cast %36 : vector<4x2x2x4xf32> to vector<16x4xf32>
    %c0_13 = arith.constant 0 : index
    %c0_14 = arith.constant 0 : index
    %38 = vector.load %arg7[%c0_13, %c0_14] : memref<4x128xf32, #tpu.memory_space<vmem>>, vector<4x128xf32>
    %cst_15 = arith.constant dense<0.000000e+00> : vector<16x128xf32>
    %39 = tpu.matmul %37, %38, %cst_15 {dimension_numbers = #tpu.dot_dimension_numbers<[1], [0], [0], [1], [0, 0, 1, 1], [], []>} : vector<16x4xf32>, vector<4x128xf32>, vector<16x128xf32> -> vector<16x128xf32>
    %40 = vector.shape_cast %39 : vector<16x128xf32> to vector<4x2x2x128xf32>
    %41 = vector.shape_cast %17 : vector<4x2x128xf32> to vector<4x1x2x128xf32>
    %42 = vector.broadcast %41 : vector<4x1x2x128xf32> to vector<4x2x2x128xf32>
    %43 = arith.mulf %40, %42 : vector<4x2x2x128xf32>
    %cst_16 = arith.constant dense<0.000000e+00> : vector<4x2x128xf32>
    %44 = vector.multi_reduction <add>, %43, %cst_16 [2] : vector<4x2x2x128xf32> to vector<4x2x128xf32>
    %45 = vector.shape_cast %44 : vector<4x2x128xf32> to vector<8x128xf32>
    %46 = arith.truncf %45 : vector<8x128xf32> to vector<8x128xbf16>
    %c0_17 = arith.constant 0 : index
    %c0_18 = arith.constant 0 : index
    %c0_19 = arith.constant 0 : index
    %47 = vector.load %arg10[%c0_17, %c0_18, %c0_19] : memref<1x128x128xbf16, #tpu.memory_space<vmem>>, vector<1x128x128xbf16>
    %48 = vector.shape_cast %47 : vector<1x128x128xbf16> to vector<128x128xbf16>
    %cst_20 = arith.constant dense<0.000000e+00> : vector<8x128xf32>
    %49 = tpu.matmul %46, %48, %cst_20 {dimension_numbers = #tpu.dot_dimension_numbers<[1], [0], [0], [1], [0, 0, 1, 1], [], []>} : vector<8x128xbf16>, vector<128x128xbf16>, vector<8x128xf32> -> vector<8x128xf32>
    %c0_21 = arith.constant 0 : index
    %c0_22 = arith.constant 0 : index
    %c0_23 = arith.constant 0 : index
    %50 = vector.load %arg11[%c0_21, %c0_22, %c0_23] : memref<1x1x128xf32, #tpu.memory_space<vmem>>, vector<1x1x128xf32>
    %51 = vector.shape_cast %50 : vector<1x1x128xf32> to vector<1x128xf32>
    %52 = vector.broadcast %51 : vector<1x128xf32> to vector<8x128xf32>
    %53 = arith.addf %49, %52 : vector<8x128xf32>
    %54 = arith.addf %53, %3 : vector<8x128xf32>
    %c0_24 = arith.constant 0 : index
    %c0_25 = arith.constant 0 : index
    %c0_26 = arith.constant 0 : index
    %55 = vector.load %arg12[%c0_24, %c0_25, %c0_26] : memref<1x1x128xf32, #tpu.memory_space<vmem>>, vector<1x1x128xf32>
    %56 = vector.shape_cast %55 : vector<1x1x128xf32> to vector<1x128xf32>
    %c0_27 = arith.constant 0 : index
    %c0_28 = arith.constant 0 : index
    %c0_29 = arith.constant 0 : index
    %57 = vector.load %arg13[%c0_27, %c0_28, %c0_29] : memref<1x1x128xf32, #tpu.memory_space<vmem>>, vector<1x1x128xf32>
    %58 = vector.shape_cast %57 : vector<1x1x128xf32> to vector<1x128xf32>
    %cst_30 = arith.constant dense<0.000000e+00> : vector<8xf32>
    %59 = vector.multi_reduction <add>, %54, %cst_30 [1] : vector<8x128xf32> to vector<8xf32>
    %60 = vector.shape_cast %59 : vector<8xf32> to vector<8x1xf32>
    %cst_31 = arith.constant 1.280000e+02 : f32
    %61 = vector.broadcast %cst_31 : f32 to vector<8x1xf32>
    %62 = arith.divf %60, %61 : vector<8x1xf32>
    %63 = vector.broadcast %62 : vector<8x1xf32> to vector<8x128xf32>
    %64 = arith.subf %54, %63 : vector<8x128xf32>
    %65 = arith.mulf %64, %64 : vector<8x128xf32>
    %cst_32 = arith.constant dense<0.000000e+00> : vector<8xf32>
    %66 = vector.multi_reduction <add>, %65, %cst_32 [1] : vector<8x128xf32> to vector<8xf32>
    %67 = vector.shape_cast %66 : vector<8xf32> to vector<8x1xf32>
    %cst_33 = arith.constant 1.280000e+02 : f32
    %68 = vector.broadcast %cst_33 : f32 to vector<8x1xf32>
    %69 = arith.divf %67, %68 : vector<8x1xf32>
    %cst_34 = arith.constant 9.99999974E-6 : f32
    %70 = vector.broadcast %cst_34 : f32 to vector<8x1xf32>
    %71 = arith.addf %69, %70 : vector<8x1xf32>
    %72 = math.rsqrt %71 : vector<8x1xf32>
    %73 = vector.broadcast %72 : vector<8x1xf32> to vector<8x128xf32>
    %74 = arith.mulf %64, %73 : vector<8x128xf32>
    %75 = vector.broadcast %56 : vector<1x128xf32> to vector<8x128xf32>
    %76 = arith.mulf %74, %75 : vector<8x128xf32>
    %77 = vector.broadcast %58 : vector<1x128xf32> to vector<8x128xf32>
    %78 = arith.addf %76, %77 : vector<8x128xf32>
    %79 = arith.truncf %78 : vector<8x128xf32> to vector<8x128xbf16>
    %c0_35 = arith.constant 0 : index
    %c0_36 = arith.constant 0 : index
    %c0_37 = arith.constant 0 : index
    %80 = vector.load %arg14[%c0_35, %c0_36, %c0_37] : memref<1x128x256xbf16, #tpu.memory_space<vmem>>, vector<1x128x256xbf16>
    %81 = vector.shape_cast %80 : vector<1x128x256xbf16> to vector<128x256xbf16>
    %cst_38 = arith.constant dense<0.000000e+00> : vector<8x256xf32>
    %82 = tpu.matmul %79, %81, %cst_38 {dimension_numbers = #tpu.dot_dimension_numbers<[1], [0], [0], [1], [0, 0, 1, 1], [], []>} : vector<8x128xbf16>, vector<128x256xbf16>, vector<8x256xf32> -> vector<8x256xf32>
    %c0_39 = arith.constant 0 : index
    %c0_40 = arith.constant 0 : index
    %c0_41 = arith.constant 0 : index
    %83 = vector.load %arg15[%c0_39, %c0_40, %c0_41] : memref<1x1x256xf32, #tpu.memory_space<vmem>>, vector<1x1x256xf32>
    %84 = vector.shape_cast %83 : vector<1x1x256xf32> to vector<1x256xf32>
    %85 = vector.broadcast %84 : vector<1x256xf32> to vector<8x256xf32>
    %86 = arith.addf %82, %85 : vector<8x256xf32>
    %cst_42 = arith.constant 0.000000e+00 : f32
    %87 = vector.broadcast %cst_42 : f32 to vector<8x256xf32>
    %88 = arith.maximumf %86, %87 : vector<8x256xf32>
    %89 = arith.truncf %88 : vector<8x256xf32> to vector<8x256xbf16>
    %c0_43 = arith.constant 0 : index
    %c0_44 = arith.constant 0 : index
    %c0_45 = arith.constant 0 : index
    %90 = vector.load %arg16[%c0_43, %c0_44, %c0_45] : memref<1x256x128xbf16, #tpu.memory_space<vmem>>, vector<1x256x128xbf16>
    %91 = vector.shape_cast %90 : vector<1x256x128xbf16> to vector<256x128xbf16>
    %cst_46 = arith.constant dense<0.000000e+00> : vector<8x128xf32>
    %92 = tpu.matmul %89, %91, %cst_46 {dimension_numbers = #tpu.dot_dimension_numbers<[1], [0], [0], [1], [0, 0, 1, 1], [], []>} : vector<8x256xbf16>, vector<256x128xbf16>, vector<8x128xf32> -> vector<8x128xf32>
    %c0_47 = arith.constant 0 : index
    %c0_48 = arith.constant 0 : index
    %c0_49 = arith.constant 0 : index
    %93 = vector.load %arg17[%c0_47, %c0_48, %c0_49] : memref<1x1x128xf32, #tpu.memory_space<vmem>>, vector<1x1x128xf32>
    %94 = vector.shape_cast %93 : vector<1x1x128xf32> to vector<1x128xf32>
    %95 = vector.broadcast %94 : vector<1x128xf32> to vector<8x128xf32>
    %96 = arith.addf %92, %95 : vector<8x128xf32>
    %97 = arith.addf %96, %78 : vector<8x128xf32>
    %c0_50 = arith.constant 0 : index
    %c0_51 = arith.constant 0 : index
    %c0_52 = arith.constant 0 : index
    %98 = vector.load %arg18[%c0_50, %c0_51, %c0_52] : memref<1x1x128xf32, #tpu.memory_space<vmem>>, vector<1x1x128xf32>
    %99 = vector.shape_cast %98 : vector<1x1x128xf32> to vector<1x128xf32>
    %c0_53 = arith.constant 0 : index
    %c0_54 = arith.constant 0 : index
    %c0_55 = arith.constant 0 : index
    %100 = vector.load %arg19[%c0_53, %c0_54, %c0_55] : memref<1x1x128xf32, #tpu.memory_space<vmem>>, vector<1x1x128xf32>
    %101 = vector.shape_cast %100 : vector<1x1x128xf32> to vector<1x128xf32>
    %cst_56 = arith.constant dense<0.000000e+00> : vector<8xf32>
    %102 = vector.multi_reduction <add>, %97, %cst_56 [1] : vector<8x128xf32> to vector<8xf32>
    %103 = vector.shape_cast %102 : vector<8xf32> to vector<8x1xf32>
    %cst_57 = arith.constant 1.280000e+02 : f32
    %104 = vector.broadcast %cst_57 : f32 to vector<8x1xf32>
    %105 = arith.divf %103, %104 : vector<8x1xf32>
    %106 = vector.broadcast %105 : vector<8x1xf32> to vector<8x128xf32>
    %107 = arith.subf %97, %106 : vector<8x128xf32>
    %108 = arith.mulf %107, %107 : vector<8x128xf32>
    %cst_58 = arith.constant dense<0.000000e+00> : vector<8xf32>
    %109 = vector.multi_reduction <add>, %108, %cst_58 [1] : vector<8x128xf32> to vector<8xf32>
    %110 = vector.shape_cast %109 : vector<8xf32> to vector<8x1xf32>
    %cst_59 = arith.constant 1.280000e+02 : f32
    %111 = vector.broadcast %cst_59 : f32 to vector<8x1xf32>
    %112 = arith.divf %110, %111 : vector<8x1xf32>
    %cst_60 = arith.constant 9.99999974E-6 : f32
    %113 = vector.broadcast %cst_60 : f32 to vector<8x1xf32>
    %114 = arith.addf %112, %113 : vector<8x1xf32>
    %115 = math.rsqrt %114 : vector<8x1xf32>
    %116 = vector.broadcast %115 : vector<8x1xf32> to vector<8x128xf32>
    %117 = arith.mulf %107, %116 : vector<8x128xf32>
    %118 = vector.broadcast %99 : vector<1x128xf32> to vector<8x128xf32>
    %119 = arith.mulf %117, %118 : vector<8x128xf32>
    %120 = vector.broadcast %101 : vector<1x128xf32> to vector<8x128xf32>
    %121 = arith.addf %119, %120 : vector<8x128xf32>
    %c0_61 = arith.constant 0 : index
    %c0_62 = arith.constant 0 : index
    %122 = vector.load %arg21[%c0_61, %c0_62] : memref<8x128xf32, #tpu.memory_space<vmem>>, vector<8x128xf32>
    tpu.vector_store %arg21[%c0_61, %c0_62], %121 {strides = array<i32>} : memref<8x128xf32, #tpu.memory_space<vmem>>, vector<8x128xf32>,
    %c1_i32 = arith.constant 1 : i32
    %123 = arith.cmpi eq, %arg1, %c1_i32 : i32
    %124 = arith.extui %123 : i1 to i32
    %c0_i32_63 = arith.constant 0 : i32
    %125 = arith.cmpi ne, %124, %c0_i32_63 : i32
    scf.if %125 {
      %c0_64 = arith.constant 0 : index
      %c0_65 = arith.constant 0 : index
      %126 = vector.load %arg20[%c0_64, %c0_65] : memref<8x128xf32, #tpu.memory_space<vmem>>, vector<8x128xf32>
      tpu.vector_store %arg20[%c0_64, %c0_65], %121 {strides = array<i32>} : memref<8x128xf32, #tpu.memory_space<vmem>>, vector<8x128xf32>,
    } else {
    }
    return
  }
  func.func @transform_0(%arg0: i32, %arg1: i32) -> (i32, i32) {
    %c0_i32 = arith.constant 0 : i32
    %c0_i32_0 = arith.constant 0 : i32
    return %arg0, %c0_i32 : i32, i32
  }
  func.func @transform_1(%arg0: i32, %arg1: i32) -> (i32, i32, i32) {
    %c0_i32 = arith.constant 0 : i32
    %c0_i32_0 = arith.constant 0 : i32
    %c0_i32_1 = arith.constant 0 : i32
    return %arg0, %c0_i32, %c0_i32_0 : i32, i32, i32
  }
  func.func @transform_2(%arg0: i32, %arg1: i32) -> (i32, i32) {
    %c0_i32 = arith.constant 0 : i32
    %c0_i32_0 = arith.constant 0 : i32
    %c0_i32_1 = arith.constant 0 : i32
    return %c0_i32, %c0_i32_0 : i32, i32
  }
  func.func @transform_3(%arg0: i32, %arg1: i32) -> (i32, i32) {
    %c0_i32 = arith.constant 0 : i32
    %c0_i32_0 = arith.constant 0 : i32
    %c0_i32_1 = arith.constant 0 : i32
    return %c0_i32, %c0_i32_0 : i32, i32
  }
  func.func @transform_4(%arg0: i32, %arg1: i32) -> (i32, i32) {
    %c0_i32 = arith.constant 0 : i32
    %c0_i32_0 = arith.constant 0 : i32
    %c0_i32_1 = arith.constant 0 : i32
    return %c0_i32, %c0_i32_0 : i32, i32
  }
  func.func @transform_5(%arg0: i32, %arg1: i32) -> (i32, i32) {
    %c0_i32 = arith.constant 0 : i32
    %c0_i32_0 = arith.constant 0 : i32
    %c0_i32_1 = arith.constant 0 : i32
    return %c0_i32, %c0_i32_0 : i32, i32
  }
  func.func @transform_6(%arg0: i32, %arg1: i32) -> (i32, i32, i32) {
    %c0_i32 = arith.constant 0 : i32
    %c0_i32_0 = arith.constant 0 : i32
    %c0_i32_1 = arith.constant 0 : i32
    return %arg1, %c0_i32, %c0_i32_0 : i32, i32, i32
  }
  func.func @transform_7(%arg0: i32, %arg1: i32) -> (i32, i32, i32) {
    %c0_i32 = arith.constant 0 : i32
    %c0_i32_0 = arith.constant 0 : i32
    %c0_i32_1 = arith.constant 0 : i32
    return %arg1, %c0_i32, %c0_i32_0 : i32, i32, i32
  }
  func.func @transform_8(%arg0: i32, %arg1: i32) -> (i32, i32, i32) {
    %c0_i32 = arith.constant 0 : i32
    %c0_i32_0 = arith.constant 0 : i32
    %c0_i32_1 = arith.constant 0 : i32
    return %arg1, %c0_i32, %c0_i32_0 : i32, i32, i32
  }
  func.func @transform_9(%arg0: i32, %arg1: i32) -> (i32, i32, i32) {
    %c0_i32 = arith.constant 0 : i32
    %c0_i32_0 = arith.constant 0 : i32
    %c0_i32_1 = arith.constant 0 : i32
    return %arg1, %c0_i32, %c0_i32_0 : i32, i32, i32
  }
  func.func @transform_10(%arg0: i32, %arg1: i32) -> (i32, i32, i32) {
    %c0_i32 = arith.constant 0 : i32
    %c0_i32_0 = arith.constant 0 : i32
    %c0_i32_1 = arith.constant 0 : i32
    return %arg1, %c0_i32, %c0_i32_0 : i32, i32, i32
  }
  func.func @transform_11(%arg0: i32, %arg1: i32) -> (i32, i32, i32) {
    %c0_i32 = arith.constant 0 : i32
    %c0_i32_0 = arith.constant 0 : i32
    %c0_i32_1 = arith.constant 0 : i32
    return %arg1, %c0_i32, %c0_i32_0 : i32, i32, i32
  }
  func.func @transform_12(%arg0: i32, %arg1: i32) -> (i32, i32, i32) {
    %c0_i32 = arith.constant 0 : i32
    %c0_i32_0 = arith.constant 0 : i32
    %c0_i32_1 = arith.constant 0 : i32
    return %arg1, %c0_i32, %c0_i32_0 : i32, i32, i32
  }
  func.func @transform_13(%arg0: i32, %arg1: i32) -> (i32, i32, i32) {
    %c0_i32 = arith.constant 0 : i32
    %c0_i32_0 = arith.constant 0 : i32
    %c0_i32_1 = arith.constant 0 : i32
    return %arg1, %c0_i32, %c0_i32_0 : i32, i32, i32
  }
  func.func @transform_14(%arg0: i32, %arg1: i32) -> (i32, i32, i32) {
    %c0_i32 = arith.constant 0 : i32
    %c0_i32_0 = arith.constant 0 : i32
    %c0_i32_1 = arith.constant 0 : i32
    return %arg1, %c0_i32, %c0_i32_0 : i32, i32, i32
  }
  func.func @transform_15(%arg0: i32, %arg1: i32) -> (i32, i32, i32) {
    %c0_i32 = arith.constant 0 : i32
    %c0_i32_0 = arith.constant 0 : i32
    %c0_i32_1 = arith.constant 0 : i32
    return %arg1, %c0_i32, %c0_i32_0 : i32, i32, i32
  }
  func.func @transform_16(%arg0: i32, %arg1: i32) -> (i32, i32, i32) {
    %c0_i32 = arith.constant 0 : i32
    %c0_i32_0 = arith.constant 0 : i32
    %c0_i32_1 = arith.constant 0 : i32
    return %arg1, %c0_i32, %c0_i32_0 : i32, i32, i32
  }
  func.func @transform_17(%arg0: i32, %arg1: i32) -> (i32, i32, i32) {
    %c0_i32 = arith.constant 0 : i32
    %c0_i32_0 = arith.constant 0 : i32
    %c0_i32_1 = arith.constant 0 : i32
    return %arg1, %c0_i32, %c0_i32_0 : i32, i32, i32
  }
  func.func @transform_18(%arg0: i32, %arg1: i32) -> (i32, i32) {
    %c0_i32 = arith.constant 0 : i32
    %c0_i32_0 = arith.constant 0 : i32
    return %arg0, %c0_i32 : i32, i32
  }
}

</mosaic_0001>

<llo_original>
// kernel: transformer_discriminator.1
$region0: #{transformer_discriminator.1}
  #allocation0 [shape = 'u32[]', space=smem, size = 0x4, offset = 0x4, fixed_abs, tag = 'smem constant byte address 0x4 - core index']
  #allocation1 [shape = 'u32[144,128]{1,0:T(1,128)}', space=vmem, size = 0x12000, scoped, tag = 'internal scratch']
  #allocation2 [shape = 'f32[8,128]{1,0:T(8,128)}', space=vmem, size = 0x1000, scoped, tag = 'scratch operand']
  %s0 = inlined_call_operand.vmem [shape: f32[16,4], index: 0, kind: input, shape index: {}]
  %s1 = inlined_call_operand.vmem [shape: f32[8,1,128], index: 1, kind: input, shape index: {}]
  %s2 = inlined_call_operand.vmem [shape: bf16[4,128], index: 2, kind: input, shape index: {}]
  %s3 = inlined_call_operand.vmem [shape: f32[1,128], index: 3, kind: input, shape index: {}]
  %s4 = inlined_call_operand.vmem [shape: f32[128,4], index: 4, kind: input, shape index: {}]
  %s5 = inlined_call_operand.vmem [shape: f32[4,128], index: 5, kind: input, shape index: {}]
  %s6 = inlined_call_operand.hbm [shape: bf16[2,128,384], index: 6, kind: input, shape index: {}]
  %s7 = inlined_call_operand.vmem [shape: f32[2,1,384], index: 7, kind: input, shape index: {}]
  %s8 = inlined_call_operand.vmem [shape: bf16[2,128,128], index: 8, kind: input, shape index: {}]
  %s9 = inlined_call_operand.vmem [shape: f32[2,1,128], index: 9, kind: input, shape index: {}]
  %s10 = inlined_call_operand.vmem [shape: f32[2,1,128], index: 10, kind: input, shape index: {}]
  %s11 = inlined_call_operand.vmem [shape: f32[2,1,128], index: 11, kind: input, shape index: {}]
  %s12 = inlined_call_operand.hbm [shape: bf16[2,128,256], index: 12, kind: input, shape index: {}]
  %s13 = inlined_call_operand.vmem [shape: f32[2,1,256], index: 13, kind: input, shape index: {}]
  %s14 = inlined_call_operand.hbm [shape: bf16[2,256,128], index: 14, kind: input, shape index: {}]
  %s15 = inlined_call_operand.vmem [shape: f32[2,1,128], index: 15, kind: input, shape index: {}]
  %s16 = inlined_call_operand.vmem [shape: f32[2,1,128], index: 16, kind: input, shape index: {}]
  %s17 = inlined_call_operand.vmem [shape: f32[2,1,128], index: 17, kind: input, shape index: {}]
  %s18 = inlined_call_operand.vmem [shape: f32[16,128], index: 18, kind: output, shape index: {}]
  %s19 = sld [smem:[#allocation0]]
  $region125: #{transformer_discriminator.1} parent=0
    _
  %s21 = ssub.s32 1, %s19
  %s22 = scalar_select 0, %s21, %s19
  $region1: #{transformer_discriminator.1} parent=0
    #allocation3 [shape = 'u8[196608]{0}', space=vmem, size = 0x30000, scoped, tag = 'input window, operand 6']
    #allocation4 [shape = 's32[2]{0}', space=sflag, size = 0x8, scoped, tag = 'scoped memory for transformer_discriminator.1']
    #allocation5 [shape = 'u8[131072]{0}', space=vmem, size = 0x20000, scoped, tag = 'input window, operand 12']
    #allocation6 [shape = 's32[2]{0}', space=sflag, size = 0x8, scoped, tag = 'scoped memory for transformer_discriminator.1']
    #allocation7 [shape = 'u8[131072]{0}', space=vmem, size = 0x20000, scoped, tag = 'input window, operand 14']
    %23 = vsyncpa [#allocation4], 0
    %s24 = scalar_lea.sflag [#allocation4], 1
    %25 = vsyncpa %s24, 0
    %26 = vsyncpa [#allocation6], 0
    %s27 = scalar_lea.sflag [#allocation6], 1
    %28 = vsyncpa %s27, 0
    loop: start=0, step=1, limit=6
    $region2: #{transformer_discriminator.1} parent=1 // loop_pre_header
      _
    $region3: #{transformer_discriminator.1} parent=1 // loop_header
      %s30 = sphi 0, %s34
      %p31 = scmp.ge.s32.totalorder %s30, 6
      %s37 = sphi 0, %s49
      %s38 = sphi 0, %s45
      %s39 = sphi 0, %s37
      %s40 = sphi 0, %s38
      %s41 = sphi 0, %s39
      %s42 = sphi 0, %s40
      %s52 = sphi 0, %s54
      %s55 = sphi 0, %s52
      %s56 = sphi 0, %s55
      %s72 = sphi 0, %s56
      %s78 = sphi 0, %s80
      %s81 = sphi 0, %s78
      %s82 = sphi 0, %s81
      %s98 = sphi 0, %s82
      %s102 = sphi 0, %s102
      %s104 = sphi 0, %s102
      %s105 = sphi 0, %s104
      %s119 = sphi 0, %s105
      %s123 = sphi 0, %s123
      %s125 = sphi 0, %s123
      %s126 = sphi 0, %s125
      %s140 = sphi 0, %s126
      %s144 = sphi 0, %s144
      %s146 = sphi 0, %s144
      %s147 = sphi 0, %s146
      %s161 = sphi 0, %s147
      %s165 = sphi 0, %s165
      %s167 = sphi 0, %s165
      %s168 = sphi 0, %s167
      %s182 = sphi 0, %s168
      %s188 = sphi 0, %s190
      %s191 = sphi 0, %s188
      %s192 = sphi 0, %s191
      %s208 = sphi 0, %s192
      %s214 = sphi 0, %s216
      %s217 = sphi 0, %s214
      %s218 = sphi 0, %s217
      %s234 = sphi 0, %s218
      %s240 = sphi 0, %s242
      %s243 = sphi 0, %s240
      %s244 = sphi 0, %s243
      %s260 = sphi 0, %s244
      %s266 = sphi 0, %s268
      %s269 = sphi 0, %s266
      %s270 = sphi 0, %s269
      %s286 = sphi 0, %s270
      %s292 = sphi 0, %s294
      %s295 = sphi 0, %s292
      %s296 = sphi 0, %s295
      %s312 = sphi 0, %s296
      %s318 = sphi 0, %s320
      %s321 = sphi 0, %s318
      %s322 = sphi 0, %s321
      %s338 = sphi 0, %s322
      %s344 = sphi 0, %s346
      %s347 = sphi 0, %s344
      %s348 = sphi 0, %s347
      %s364 = sphi 0, %s348
      %s370 = sphi 0, %s372
      %s373 = sphi 0, %s370
      %s374 = sphi 0, %s373
      %s390 = sphi 0, %s374
      %s396 = sphi 0, %s398
      %s399 = sphi 0, %s396
      %s400 = sphi 0, %s399
      %s416 = sphi 0, %s400
      %s422 = sphi 0, %s424
      %s425 = sphi 0, %s422
      %s426 = sphi 0, %s425
      %s442 = sphi 0, %s426
      %s448 = sphi 0, %s450
      %s451 = sphi 0, %s448
      %s452 = sphi 0, %s451
      %s468 = sphi 0, %s452
      %s474 = sphi 0, %s476
      %s477 = sphi 0, %s474
      %s478 = sphi 0, %s477
      %s494 = sphi 0, %s478
      %s500 = sphi 0, %s502
      %s503 = sphi 0, %s500
      %s504 = sphi 0, %s503
      %s520 = sphi 0, %s504
    $region4: #{transformer_discriminator.1} parent=1 // loop_header_branch
      %33 = sbr.rel (%p31) target = $region8
    $region5: #{transformer_discriminator.1} parent=1 // loop_body
      %s35 = ssub.s32 %s30, 1
      %s36 = ssub.s32 %s30, 2
      %s43 = sadd.s32 1, %s38
      %p44 = scmp.ge.s32.totalorder %s43, 2
      %s45 = scalar_select %p44, 0, %s43
      %s46 = sadd.s32 1, %s37
      %s47 = scalar_select %p44, %s46, %s37
      %p48 = scmp.ge.s32.totalorder %s47, 2
      %s49 = scalar_select %p48, 0, %s47
      %s50 = ssub.s32 %s37, %s49
      %p51 = scmp.eq.s32.totalorder %s50, 0
      %s53 = sadd.s32 %s52, 1
      %s54 = scalar_select %p51, %s52, %s53
      %p57 = pneg %p51
      %p58 = scmp.eq.s32.totalorder %s30, 3
      %p59 = por %p57, %p58
      %p60 = scmp.ne.s32.totalorder %s52, %s55
      %p61 = scmp.eq.s32.totalorder %s30, 0
      %p62 = por %p60, %p61
      %p63 = scmp.ne.s32.totalorder %s52, %s55
      %p64 = scmp.eq.s32.totalorder %s35, 3
      %p65 = por %p63, %p64
      %p66 = scmp.ne.s32.totalorder %s55, %s56
      %p67 = scmp.eq.s32.totalorder %s35, 0
      %p68 = por %p66, %p67
      %p69 = scmp.ne.s32.totalorder %s55, %s56
      %p70 = scmp.eq.s32.totalorder %s36, 3
      %p71 = por %p69, %p70
      %p73 = scmp.ne.s32.totalorder %s56, %s72
      %p74 = scmp.eq.s32.totalorder %s36, 0
      %p75 = por %p73, %p74
      %s76 = ssub.s32 %s37, %s49
      %p77 = scmp.eq.s32.totalorder %s76, 0
      %s79 = sadd.s32 %s78, 1
      %s80 = scalar_select %p77, %s78, %s79
      %p83 = pneg %p77
      %p84 = scmp.eq.s32.totalorder %s30, 3
      %p85 = por %p83, %p84
      %p86 = scmp.ne.s32.totalorder %s78, %s81
      %p87 = scmp.eq.s32.totalorder %s30, 0
      %p88 = por %p86, %p87
      %p89 = scmp.ne.s32.totalorder %s78, %s81
      %p90 = scmp.eq.s32.totalorder %s35, 3
      %p91 = por %p89, %p90
      %p92 = scmp.ne.s32.totalorder %s81, %s82
      %p93 = scmp.eq.s32.totalorder %s35, 0
      %p94 = por %p92, %p93
      %p95 = scmp.ne.s32.totalorder %s81, %s82
      %p96 = scmp.eq.s32.totalorder %s36, 3
      %p97 = por %p95, %p96
      %p99 = scmp.ne.s32.totalorder %s82, %s98
      %p100 = scmp.eq.s32.totalorder %s36, 0
      %p101 = por %p99, %p100
      %s103 = sadd.s32 %s102, 1
      %p106 = scmp.eq.s32.totalorder %s30, 3
      %p107 = scmp.ne.s32.totalorder %s102, %s104
      %p108 = scmp.eq.s32.totalorder %s30, 0
      %p109 = por %p107, %p108
      %p110 = scmp.ne.s32.totalorder %s102, %s104
      %p111 = scmp.eq.s32.totalorder %s35, 3
      %p112 = por %p110, %p111
      %p113 = scmp.ne.s32.totalorder %s104, %s105
      %p114 = scmp.eq.s32.totalorder %s35, 0
      %p115 = por %p113, %p114
      %p116 = scmp.ne.s32.totalorder %s104, %s105
      %p117 = scmp.eq.s32.totalorder %s36, 3
      %p118 = por %p116, %p117
      %p120 = scmp.ne.s32.totalorder %s105, %s119
      %p121 = scmp.eq.s32.totalorder %s36, 0
      %p122 = por %p120, %p121
      %s124 = sadd.s32 %s123, 1
      %p127 = scmp.eq.s32.totalorder %s30, 3
      %p128 = scmp.ne.s32.totalorder %s123, %s125
      %p129 = scmp.eq.s32.totalorder %s30, 0
      %p130 = por %p128, %p129
      %p131 = scmp.ne.s32.totalorder %s123, %s125
      %p132 = scmp.eq.s32.totalorder %s35, 3
      %p133 = por %p131, %p132
      %p134 = scmp.ne.s32.totalorder %s125, %s126
      %p135 = scmp.eq.s32.totalorder %s35, 0
      %p136 = por %p134, %p135
      %p137 = scmp.ne.s32.totalorder %s125, %s126
      %p138 = scmp.eq.s32.totalorder %s36, 3
      %p139 = por %p137, %p138
      %p141 = scmp.ne.s32.totalorder %s126, %s140
      %p142 = scmp.eq.s32.totalorder %s36, 0
      %p143 = por %p141, %p142
      %s145 = sadd.s32 %s144, 1
      %p148 = scmp.eq.s32.totalorder %s30, 3
      %p149 = scmp.ne.s32.totalorder %s144, %s146
      %p150 = scmp.eq.s32.totalorder %s30, 0
      %p151 = por %p149, %p150
      %p152 = scmp.ne.s32.totalorder %s144, %s146
      %p153 = scmp.eq.s32.totalorder %s35, 3
      %p154 = por %p152, %p153
      %p155 = scmp.ne.s32.totalorder %s146, %s147
      %p156 = scmp.eq.s32.totalorder %s35, 0
      %p157 = por %p155, %p156
      %p158 = scmp.ne.s32.totalorder %s146, %s147
      %p159 = scmp.eq.s32.totalorder %s36, 3
      %p160 = por %p158, %p159
      %p162 = scmp.ne.s32.totalorder %s147, %s161
      %p163 = scmp.eq.s32.totalorder %s36, 0
      %p164 = por %p162, %p163
      %s166 = sadd.s32 %s165, 1
      %p169 = scmp.eq.s32.totalorder %s30, 3
      %p170 = scmp.ne.s32.totalorder %s165, %s167
      %p171 = scmp.eq.s32.totalorder %s30, 0
      %p172 = por %p170, %p171
      %p173 = scmp.ne.s32.totalorder %s165, %s167
      %p174 = scmp.eq.s32.totalorder %s35, 3
      %p175 = por %p173, %p174
      %p176 = scmp.ne.s32.totalorder %s167, %s168
      %p177 = scmp.eq.s32.totalorder %s35, 0
      %p178 = por %p176, %p177
      %p179 = scmp.ne.s32.totalorder %s167, %s168
      %p180 = scmp.eq.s32.totalorder %s36, 3
      %p181 = por %p179, %p180
      %p183 = scmp.ne.s32.totalorder %s168, %s182
      %p184 = scmp.eq.s32.totalorder %s36, 0
      %p185 = por %p183, %p184
      %s186 = ssub.s32 %s38, %s45
      %p187 = scmp.eq.s32.totalorder %s186, 0
      %s189 = sadd.s32 %s188, 1
      %s190 = scalar_select %p187, %s188, %s189
      %p193 = pneg %p187
      %p194 = scmp.eq.s32.totalorder %s30, 3
      %p195 = por %p193, %p194
      %p196 = scmp.ne.s32.totalorder %s188, %s191
      %p197 = scmp.eq.s32.totalorder %s30, 0
      %p198 = por %p196, %p197
      %p199 = scmp.ne.s32.totalorder %s188, %s191
      %p200 = scmp.eq.s32.totalorder %s35, 3
      %p201 = por %p199, %p200
      %p202 = scmp.ne.s32.totalorder %s191, %s192
      %p203 = scmp.eq.s32.totalorder %s35, 0
      %p204 = por %p202, %p203
      %p205 = scmp.ne.s32.totalorder %s191, %s192
      %p206 = scmp.eq.s32.totalorder %s36, 3
      %p207 = por %p205, %p206
      %p209 = scmp.ne.s32.totalorder %s192, %s208
      %p210 = scmp.eq.s32.totalorder %s36, 0
      %p211 = por %p209, %p210
      %s212 = ssub.s32 %s38, %s45
      %p213 = scmp.eq.s32.totalorder %s212, 0
      %s215 = sadd.s32 %s214, 1
      %s216 = scalar_select %p213, %s214, %s215
      %p219 = pneg %p213
      %p220 = scmp.eq.s32.totalorder %s30, 3
      %p221 = por %p219, %p220
      %p222 = scmp.ne.s32.totalorder %s214, %s217
      %p223 = scmp.eq.s32.totalorder %s30, 0
      %p224 = por %p222, %p223
      %p225 = scmp.ne.s32.totalorder %s214, %s217
      %p226 = scmp.eq.s32.totalorder %s35, 3
      %p227 = por %p225, %p226
      %p228 = scmp.ne.s32.totalorder %s217, %s218
      %p229 = scmp.eq.s32.totalorder %s35, 0
      %p230 = por %p228, %p229
      %p231 = scmp.ne.s32.totalorder %s217, %s218
      %p232 = scmp.eq.s32.totalorder %s36, 3
      %p233 = por %p231, %p232
      %p235 = scmp.ne.s32.totalorder %s218, %s234
      %p236 = scmp.eq.s32.totalorder %s36, 0
      %p237 = por %p235, %p236
      %s238 = ssub.s32 %s38, %s45
      %p239 = scmp.eq.s32.totalorder %s238, 0
      %s241 = sadd.s32 %s240, 1
      %s242 = scalar_select %p239, %s240, %s241
      %p245 = pneg %p239
      %p246 = scmp.eq.s32.totalorder %s30, 3
      %p247 = por %p245, %p246
      %p248 = scmp.ne.s32.totalorder %s240, %s243
      %p249 = scmp.eq.s32.totalorder %s30, 0
      %p250 = por %p248, %p249
      %p251 = scmp.ne.s32.totalorder %s240, %s243
      %p252 = scmp.eq.s32.totalorder %s35, 3
      %p253 = por %p251, %p252
      %p254 = scmp.ne.s32.totalorder %s243, %s244
      %p255 = scmp.eq.s32.totalorder %s35, 0
      %p256 = por %p254, %p255
      %p257 = scmp.ne.s32.totalorder %s243, %s244
      %p258 = scmp.eq.s32.totalorder %s36, 3
      %p259 = por %p257, %p258
      %p261 = scmp.ne.s32.totalorder %s244, %s260
      %p262 = scmp.eq.s32.totalorder %s36, 0
      %p263 = por %p261, %p262
      %s264 = ssub.s32 %s38, %s45
      %p265 = scmp.eq.s32.totalorder %s264, 0
      %s267 = sadd.s32 %s266, 1
      %s268 = scalar_select %p265, %s266, %s267
      %p271 = pneg %p265
      %p272 = scmp.eq.s32.totalorder %s30, 3
      %p273 = por %p271, %p272
      %p274 = scmp.ne.s32.totalorder %s266, %s269
      %p275 = scmp.eq.s32.totalorder %s30, 0
      %p276 = por %p274, %p275
      %p277 = scmp.ne.s32.totalorder %s266, %s269
      %p278 = scmp.eq.s32.totalorder %s35, 3
      %p279 = por %p277, %p278
      %p280 = scmp.ne.s32.totalorder %s269, %s270
      %p281 = scmp.eq.s32.totalorder %s35, 0
      %p282 = por %p280, %p281
      %p283 = scmp.ne.s32.totalorder %s269, %s270
      %p284 = scmp.eq.s32.totalorder %s36, 3
      %p285 = por %p283, %p284
      %p287 = scmp.ne.s32.totalorder %s270, %s286
      %p288 = scmp.eq.s32.totalorder %s36, 0
      %p289 = por %p287, %p288
      %s290 = ssub.s32 %s38, %s45
      %p291 = scmp.eq.s32.totalorder %s290, 0
      %s293 = sadd.s32 %s292, 1
      %s294 = scalar_select %p291, %s292, %s293
      %p297 = pneg %p291
      %p298 = scmp.eq.s32.totalorder %s30, 3
      %p299 = por %p297, %p298
      %p300 = scmp.ne.s32.totalorder %s292, %s295
      %p301 = scmp.eq.s32.totalorder %s30, 0
      %p302 = por %p300, %p301
      %p303 = scmp.ne.s32.totalorder %s292, %s295
      %p304 = scmp.eq.s32.totalorder %s35, 3
      %p305 = por %p303, %p304
      %p306 = scmp.ne.s32.totalorder %s295, %s296
      %p307 = scmp.eq.s32.totalorder %s35, 0
      %p308 = por %p306, %p307
      %p309 = scmp.ne.s32.totalorder %s295, %s296
      %p310 = scmp.eq.s32.totalorder %s36, 3
      %p311 = por %p309, %p310
      %p313 = scmp.ne.s32.totalorder %s296, %s312
      %p314 = scmp.eq.s32.totalorder %s36, 0
      %p315 = por %p313, %p314
      %s316 = ssub.s32 %s38, %s45
      %p317 = scmp.eq.s32.totalorder %s316, 0
      %s319 = sadd.s32 %s318, 1
      %s320 = scalar_select %p317, %s318, %s319
      %p323 = pneg %p317
      %p324 = scmp.eq.s32.totalorder %s30, 3
      %p325 = por %p323, %p324
      %p326 = scmp.ne.s32.totalorder %s318, %s321
      %p327 = scmp.eq.s32.totalorder %s30, 0
      %p328 = por %p326, %p327
      %p329 = scmp.ne.s32.totalorder %s318, %s321
      %p330 = scmp.eq.s32.totalorder %s35, 3
      %p331 = por %p329, %p330
      %p332 = scmp.ne.s32.totalorder %s321, %s322
      %p333 = scmp.eq.s32.totalorder %s35, 0
      %p334 = por %p332, %p333
      %p335 = scmp.ne.s32.totalorder %s321, %s322
      %p336 = scmp.eq.s32.totalorder %s36, 3
      %p337 = por %p335, %p336
      %p339 = scmp.ne.s32.totalorder %s322, %s338
      %p340 = scmp.eq.s32.totalorder %s36, 0
      %p341 = por %p339, %p340
      %s342 = ssub.s32 %s38, %s45
      %p343 = scmp.eq.s32.totalorder %s342, 0
      %s345 = sadd.s32 %s344, 1
      %s346 = scalar_select %p343, %s344, %s345
      %p349 = pneg %p343
      %p350 = scmp.eq.s32.totalorder %s30, 3
      %p351 = por %p349, %p350
      %p352 = scmp.ne.s32.totalorder %s344, %s347
      %p353 = scmp.eq.s32.totalorder %s30, 0
      %p354 = por %p352, %p353
      %p355 = scmp.ne.s32.totalorder %s344, %s347
      %p356 = scmp.eq.s32.totalorder %s35, 3
      %p357 = por %p355, %p356
      %p358 = scmp.ne.s32.totalorder %s347, %s348
      %p359 = scmp.eq.s32.totalorder %s35, 0
      %p360 = por %p358, %p359
      %p361 = scmp.ne.s32.totalorder %s347, %s348
      %p362 = scmp.eq.s32.totalorder %s36, 3
      %p363 = por %p361, %p362
      %p365 = scmp.ne.s32.totalorder %s348, %s364
      %p366 = scmp.eq.s32.totalorder %s36, 0
      %p367 = por %p365, %p366
      %s368 = ssub.s32 %s38, %s45
      %p369 = scmp.eq.s32.totalorder %s368, 0
      %s371 = sadd.s32 %s370, 1
      %s372 = scalar_select %p369, %s370, %s371
      %p375 = pneg %p369
      %p376 = scmp.eq.s32.totalorder %s30, 3
      %p377 = por %p375, %p376
      %p378 = scmp.ne.s32.totalorder %s370, %s373
      %p379 = scmp.eq.s32.totalorder %s30, 0
      %p380 = por %p378, %p379
      %p381 = scmp.ne.s32.totalorder %s370, %s373
      %p382 = scmp.eq.s32.totalorder %s35, 3
      %p383 = por %p381, %p382
      %p384 = scmp.ne.s32.totalorder %s373, %s374
      %p385 = scmp.eq.s32.totalorder %s35, 0
      %p386 = por %p384, %p385
      %p387 = scmp.ne.s32.totalorder %s373, %s374
      %p388 = scmp.eq.s32.totalorder %s36, 3
      %p389 = por %p387, %p388
      %p391 = scmp.ne.s32.totalorder %s374, %s390
      %p392 = scmp.eq.s32.totalorder %s36, 0
      %p393 = por %p391, %p392
      %s394 = ssub.s32 %s38, %s45
      %p395 = scmp.eq.s32.totalorder %s394, 0
      %s397 = sadd.s32 %s396, 1
      %s398 = scalar_select %p395, %s396, %s397
      %p401 = pneg %p395
      %p402 = scmp.eq.s32.totalorder %s30, 3
      %p403 = por %p401, %p402
      %p404 = scmp.ne.s32.totalorder %s396, %s399
      %p405 = scmp.eq.s32.totalorder %s30, 0
      %p406 = por %p404, %p405
      %p407 = scmp.ne.s32.totalorder %s396, %s399
      %p408 = scmp.eq.s32.totalorder %s35, 3
      %p409 = por %p407, %p408
      %p410 = scmp.ne.s32.totalorder %s399, %s400
      %p411 = scmp.eq.s32.totalorder %s35, 0
      %p412 = por %p410, %p411
      %p413 = scmp.ne.s32.totalorder %s399, %s400
      %p414 = scmp.eq.s32.totalorder %s36, 3
      %p415 = por %p413, %p414
      %p417 = scmp.ne.s32.totalorder %s400, %s416
      %p418 = scmp.eq.s32.totalorder %s36, 0
      %p419 = por %p417, %p418
      %s420 = ssub.s32 %s38, %s45
      %p421 = scmp.eq.s32.totalorder %s420, 0
      %s423 = sadd.s32 %s422, 1
      %s424 = scalar_select %p421, %s422, %s423
      %p427 = pneg %p421
      %p428 = scmp.eq.s32.totalorder %s30, 3
      %p429 = por %p427, %p428
      %p430 = scmp.ne.s32.totalorder %s422, %s425
      %p431 = scmp.eq.s32.totalorder %s30, 0
      %p432 = por %p430, %p431
      %p433 = scmp.ne.s32.totalorder %s422, %s425
      %p434 = scmp.eq.s32.totalorder %s35, 3
      %p435 = por %p433, %p434
      %p436 = scmp.ne.s32.totalorder %s425, %s426
      %p437 = scmp.eq.s32.totalorder %s35, 0
      %p438 = por %p436, %p437
      %p439 = scmp.ne.s32.totalorder %s425, %s426
      %p440 = scmp.eq.s32.totalorder %s36, 3
      %p441 = por %p439, %p440
      %p443 = scmp.ne.s32.totalorder %s426, %s442
      %p444 = scmp.eq.s32.totalorder %s36, 0
      %p445 = por %p443, %p444
      %s446 = ssub.s32 %s38, %s45
      %p447 = scmp.eq.s32.totalorder %s446, 0
      %s449 = sadd.s32 %s448, 1
      %s450 = scalar_select %p447, %s448, %s449
      %p453 = pneg %p447
      %p454 = scmp.eq.s32.totalorder %s30, 3
      %p455 = por %p453, %p454
      %p456 = scmp.ne.s32.totalorder %s448, %s451
      %p457 = scmp.eq.s32.totalorder %s30, 0
      %p458 = por %p456, %p457
      %p459 = scmp.ne.s32.totalorder %s448, %s451
      %p460 = scmp.eq.s32.totalorder %s35, 3
      %p461 = por %p459, %p460
      %p462 = scmp.ne.s32.totalorder %s451, %s452
      %p463 = scmp.eq.s32.totalorder %s35, 0
      %p464 = por %p462, %p463
      %p465 = scmp.ne.s32.totalorder %s451, %s452
      %p466 = scmp.eq.s32.totalorder %s36, 3
      %p467 = por %p465, %p466
      %p469 = scmp.ne.s32.totalorder %s452, %s468
      %p470 = scmp.eq.s32.totalorder %s36, 0
      %p471 = por %p469, %p470
      %s472 = ssub.s32 %s38, %s45
      %p473 = scmp.eq.s32.totalorder %s472, 0
      %s475 = sadd.s32 %s474, 1
      %s476 = scalar_select %p473, %s474, %s475
      %p479 = pneg %p473
      %p480 = scmp.eq.s32.totalorder %s30, 3
      %p481 = por %p479, %p480
      %p482 = scmp.ne.s32.totalorder %s474, %s477
      %p483 = scmp.eq.s32.totalorder %s30, 0
      %p484 = por %p482, %p483
      %p485 = scmp.ne.s32.totalorder %s474, %s477
      %p486 = scmp.eq.s32.totalorder %s35, 3
      %p487 = por %p485, %p486
      %p488 = scmp.ne.s32.totalorder %s477, %s478
      %p489 = scmp.eq.s32.totalorder %s35, 0
      %p490 = por %p488, %p489
      %p491 = scmp.ne.s32.totalorder %s477, %s478
      %p492 = scmp.eq.s32.totalorder %s36, 3
      %p493 = por %p491, %p492
      %p495 = scmp.ne.s32.totalorder %s478, %s494
      %p496 = scmp.eq.s32.totalorder %s36, 0
      %p497 = por %p495, %p496
      %s498 = ssub.s32 %s37, %s49
      %p499 = scmp.eq.s32.totalorder %s498, 0
      %s501 = sadd.s32 %s500, 1
      %s502 = scalar_select %p499, %s500, %s501
      %p505 = pneg %p499
      %p506 = scmp.eq.s32.totalorder %s30, 3
      %p507 = por %p505, %p506
      %p508 = scmp.ne.s32.totalorder %s500, %s503
      %p509 = scmp.eq.s32.totalorder %s30, 0
      %p510 = por %p508, %p509
      %p511 = scmp.ne.s32.totalorder %s500, %s503
      %p512 = scmp.eq.s32.totalorder %s35, 3
      %p513 = por %p511, %p512
      %p514 = scmp.ne.s32.totalorder %s503, %s504
      %p515 = scmp.eq.s32.totalorder %s35, 0
      %p516 = por %p514, %p515
      %p517 = scmp.ne.s32.totalorder %s503, %s504
      %p518 = scmp.eq.s32.totalorder %s36, 3
      %p519 = por %p517, %p518
      %p521 = scmp.ne.s32.totalorder %s504, %s520
      %p522 = scmp.eq.s32.totalorder %s36, 0
      %p523 = por %p521, %p522
      %p524 = scmp.le.s32.totalorder 1, %s30
      %p525 = scmp.lt.s32.totalorder %s30, 5
      %p526 = pnand %p524, %p525
      %p527 = pneg %p526
      // Predicated region
      $region9: #{transformer_discriminator.1} parent=5 // pred_check
        _
      $region10: #{transformer_discriminator.1} parent=5 // pred_check_branch
        %529 = sbr.rel (%p526) target = $region12
      $region11: #{transformer_discriminator.1} parent=5 // pred_region
        %s530 = ssub.s32 %s30, 1
        // Predicated region
        $region13: #{transformer_discriminator.1} parent=11 // pred_check
          %p531 = pneg %p115
        $region14: #{transformer_discriminator.1} parent=11 // pred_check_branch
          %533 = sbr.rel (%p531) target = $region16
        $region15: #{transformer_discriminator.1} parent=11 // pred_region
          _
        $region16: #{transformer_discriminator.1} parent=11 // pred_fallthru
          _
        // Predicated region
        $region17: #{transformer_discriminator.1} parent=11 // pred_check
          %p534 = pneg %p136
        $region18: #{transformer_discriminator.1} parent=11 // pred_check_branch
          %536 = sbr.rel (%p534) target = $region20
        $region19: #{transformer_discriminator.1} parent=11 // pred_region
          _
        $region20: #{transformer_discriminator.1} parent=11 // pred_fallthru
          _
        // Predicated region
        $region21: #{transformer_discriminator.1} parent=11 // pred_check
          %p537 = pneg %p157
        $region22: #{transformer_discriminator.1} parent=11 // pred_check_branch
          %539 = sbr.rel (%p537) target = $region24
        $region23: #{transformer_discriminator.1} parent=11 // pred_region
          _
        $region24: #{transformer_discriminator.1} parent=11 // pred_fallthru
          _
        // Predicated region
        $region25: #{transformer_discriminator.1} parent=11 // pred_check
          %p540 = pneg %p178
        $region26: #{transformer_discriminator.1} parent=11 // pred_check_branch
          %542 = sbr.rel (%p540) target = $region28
        $region27: #{transformer_discriminator.1} parent=11 // pred_region
          _
        $region28: #{transformer_discriminator.1} parent=11 // pred_fallthru
          _
      $region12: #{transformer_discriminator.1} parent=5 // pred_fallthru
        _
      %p543 = scmp.lt.s32.totalorder %s30, 4
      // Predicated region
      $region29: #{transformer_discriminator.1} parent=5 // pred_check
        %p544 = pneg %p543
      $region30: #{transformer_discriminator.1} parent=5 // pred_check_branch
        %546 = sbr.rel (%p544) target = $region32
      $region31: #{transformer_discriminator.1} parent=5 // pred_region
        // Predicated region
        $region33: #{transformer_discriminator.1} parent=31 // pred_check
          %p547 = pneg %p62
        $region34: #{transformer_discriminator.1} parent=31 // pred_check_branch
          %549 = sbr.rel (%p547) target = $region36
        $region35: #{transformer_discriminator.1} parent=31 // pred_region
          %p550 = scmp.lt.s32.totalorder %s37, 1
          %s551 = scalar_select %p550, %s37, 1
          %s552 = smul.addr %s551, 8
          %s553 = scalar_lea.vmem %s0, %s552
        $region36: #{transformer_discriminator.1} parent=31 // pred_fallthru
          _
        // Predicated region
        $region37: #{transformer_discriminator.1} parent=31 // pred_check
          %p554 = pneg %p88
        $region38: #{transformer_discriminator.1} parent=31 // pred_check_branch
          %556 = sbr.rel (%p554) target = $region40
        $region39: #{transformer_discriminator.1} parent=31 // pred_region
          %s557 = smul.u32 4, %s37
          %p558 = scmp.lt.s32.totalorder %s557, 7
          %s559 = scalar_select %p558, %s557, 7
          %s560 = scalar_lea.vmem %s1, %s559
          %s561 = smul.u32 4, %s37
        $region40: #{transformer_discriminator.1} parent=31 // pred_fallthru
          _
        // Predicated region
        $region41: #{transformer_discriminator.1} parent=31 // pred_check
          %p562 = pneg %p198
        $region42: #{transformer_discriminator.1} parent=31 // pred_check_branch
          %564 = sbr.rel (%p562) target = $region44
        $region43: #{transformer_discriminator.1} parent=31 // pred_region
          %s565 = sand.u32 %s188, 1
          %s566 = scalar_lea.sflag [#allocation4], %s565
          %s567 = sand.u32 %s188, 1
          %s568 = smul.addr %s567, 192
          %s569 = scalar_lea.vmem [#allocation3], %s568
          %s571 = ssub.s32 3072, 3072
          %572 = vsyncadd %s566, %s571
          %s573 = smul.addr %s38, 48
          %s574 = smul.addr %s573, 64
          %s575 = scalar_lea.hbm %s6, %s574
          %s576 = sshll.u32 %s569, 4
          %s577 = int_to_ptr.vmem [resolvable:$true] %s576
          %582 = dma.hbm_to_vmem [thread:$0]  %s575, 3072, %s577, %s566, 192, 192, 12
        $region44: #{transformer_discriminator.1} parent=31 // pred_fallthru
          _
        // Predicated region
        $region45: #{transformer_discriminator.1} parent=31 // pred_check
          %p583 = pneg %p224
        $region46: #{transformer_discriminator.1} parent=31 // pred_check_branch
          %585 = sbr.rel (%p583) target = $region48
        $region47: #{transformer_discriminator.1} parent=31 // pred_region
          %p586 = scmp.lt.s32.totalorder %s38, 1
          %s587 = scalar_select %p586, %s38, 1
          %s588 = smul.addr %s587, 3
          %s589 = scalar_lea.vmem %s7, %s588
        $region48: #{transformer_discriminator.1} parent=31 // pred_fallthru
          _
        // Predicated region
        $region49: #{transformer_discriminator.1} parent=31 // pred_check
          %p590 = pneg %p250
        $region50: #{transformer_discriminator.1} parent=31 // pred_check_branch
          %592 = sbr.rel (%p590) target = $region52
        $region51: #{transformer_discriminator.1} parent=31 // pred_region
          %p593 = scmp.lt.s32.totalorder %s38, 1
          %s594 = scalar_select %p593, %s38, 1
          %s595 = smul.addr %s594, 16
          %s596 = smul.addr %s595, 4
          %s597 = scalar_lea.vmem %s8, %s596
        $region52: #{transformer_discriminator.1} parent=31 // pred_fallthru
          _
        // Predicated region
        $region53: #{transformer_discriminator.1} parent=31 // pred_check
          %p598 = pneg %p276
        $region54: #{transformer_discriminator.1} parent=31 // pred_check_branch
          %600 = sbr.rel (%p598) target = $region56
        $region55: #{transformer_discriminator.1} parent=31 // pred_region
          %p601 = scmp.lt.s32.totalorder %s38, 1
          %s602 = scalar_select %p601, %s38, 1
          %s603 = scalar_lea.vmem %s9, %s602
        $region56: #{transformer_discriminator.1} parent=31 // pred_fallthru
          _
        // Predicated region
        $region57: #{transformer_discriminator.1} parent=31 // pred_check
          %p604 = pneg %p302
        $region58: #{transformer_discriminator.1} parent=31 // pred_check_branch
          %606 = sbr.rel (%p604) target = $region60
        $region59: #{transformer_discriminator.1} parent=31 // pred_region
          %p607 = scmp.lt.s32.totalorder %s38, 1
          %s608 = scalar_select %p607, %s38, 1
          %s609 = scalar_lea.vmem %s10, %s608
        $region60: #{transformer_discriminator.1} parent=31 // pred_fallthru
          _
        // Predicated region
        $region61: #{transformer_discriminator.1} parent=31 // pred_check
          %p610 = pneg %p328
        $region62: #{transformer_discriminator.1} parent=31 // pred_check_branch
          %612 = sbr.rel (%p610) target = $region64
        $region63: #{transformer_discriminator.1} parent=31 // pred_region
          %p613 = scmp.lt.s32.totalorder %s38, 1
          %s614 = scalar_select %p613, %s38, 1
          %s615 = scalar_lea.vmem %s11, %s614
        $region64: #{transformer_discriminator.1} parent=31 // pred_fallthru
          _
        // Predicated region
        $region65: #{transformer_discriminator.1} parent=31 // pred_check
          %p616 = pneg %p354
        $region66: #{transformer_discriminator.1} parent=31 // pred_check_branch
          %618 = sbr.rel (%p616) target = $region68
        $region67: #{transformer_discriminator.1} parent=31 // pred_region
          %s619 = sand.u32 %s30, 1
          %s620 = scalar_lea.sflag [#allocation6], %s619
          %s621 = sand.u32 %s344, 1
          %s622 = smul.addr %s621, 128
          %s623 = scalar_lea.vmem [#allocation5], %s622
          %s625 = ssub.s32 2048, 2048
          %626 = vsyncadd %s620, %s625
          %s627 = smul.addr %s38, 32
          %s628 = smul.addr %s627, 64
          %s629 = scalar_lea.hbm %s12, %s628
          %s630 = sshll.u32 %s623, 4
          %s631 = int_to_ptr.vmem [resolvable:$true] %s630
          %636 = dma.hbm_to_vmem [thread:$0]  %s629, 2048, %s631, %s620, 128, 128, 8
        $region68: #{transformer_discriminator.1} parent=31 // pred_fallthru
          _
        // Predicated region
        $region69: #{transformer_discriminator.1} parent=31 // pred_check
          %p637 = pneg %p380
        $region70: #{transformer_discriminator.1} parent=31 // pred_check_branch
          %639 = sbr.rel (%p637) target = $region72
        $region71: #{transformer_discriminator.1} parent=31 // pred_region
          %p640 = scmp.lt.s32.totalorder %s38, 1
          %s641 = scalar_select %p640, %s38, 1
          %s642 = smul.addr %s641, 2
          %s643 = scalar_lea.vmem %s13, %s642
        $region72: #{transformer_discriminator.1} parent=31 // pred_fallthru
          _
        // Predicated region
        $region73: #{transformer_discriminator.1} parent=31 // pred_check
          %p644 = pneg %p406
        $region74: #{transformer_discriminator.1} parent=31 // pred_check_branch
          %646 = sbr.rel (%p644) target = $region76
        $region75: #{transformer_discriminator.1} parent=31 // pred_region
          %s647 = sand.u32 %s30, 1
          %s648 = scalar_lea.sflag [#allocation6], %s647
          %s649 = sand.u32 %s396, 1
          %s650 = smul.addr %s649, 128
          %s651 = scalar_lea.vmem [#allocation7], %s650
          %s653 = ssub.s32 2048, 2048
          %654 = vsyncadd %s648, %s653
          %s655 = smul.addr %s38, 32
          %s656 = smul.addr %s655, 64
          %s657 = scalar_lea.hbm %s14, %s656
          %s658 = sshll.u32 %s651, 4
          %s659 = int_to_ptr.vmem [resolvable:$true] %s658
          %664 = dma.hbm_to_vmem [thread:$0]  %s657, 2048, %s659, %s648, 64, 64, 4
        $region76: #{transformer_discriminator.1} parent=31 // pred_fallthru
          _
        // Predicated region
        $region77: #{transformer_discriminator.1} parent=31 // pred_check
          %p665 = pneg %p432
        $region78: #{transformer_discriminator.1} parent=31 // pred_check_branch
          %667 = sbr.rel (%p665) target = $region80
        $region79: #{transformer_discriminator.1} parent=31 // pred_region
          %p668 = scmp.lt.s32.totalorder %s38, 1
          %s669 = scalar_select %p668, %s38, 1
          %s670 = scalar_lea.vmem %s15, %s669
        $region80: #{transformer_discriminator.1} parent=31 // pred_fallthru
          _
        // Predicated region
        $region81: #{transformer_discriminator.1} parent=31 // pred_check
          %p671 = pneg %p458
        $region82: #{transformer_discriminator.1} parent=31 // pred_check_branch
          %673 = sbr.rel (%p671) target = $region84
        $region83: #{transformer_discriminator.1} parent=31 // pred_region
          %p674 = scmp.lt.s32.totalorder %s38, 1
          %s675 = scalar_select %p674, %s38, 1
          %s676 = scalar_lea.vmem %s16, %s675
        $region84: #{transformer_discriminator.1} parent=31 // pred_fallthru
          _
        // Predicated region
        $region85: #{transformer_discriminator.1} parent=31 // pred_check
          %p677 = pneg %p484
        $region86: #{transformer_discriminator.1} parent=31 // pred_check_branch
          %679 = sbr.rel (%p677) target = $region88
        $region87: #{transformer_discriminator.1} parent=31 // pred_region
          %p680 = scmp.lt.s32.totalorder %s38, 1
          %s681 = scalar_select %p680, %s38, 1
          %s682 = scalar_lea.vmem %s17, %s681
        $region88: #{transformer_discriminator.1} parent=31 // pred_fallthru
          _
      $region32: #{transformer_discriminator.1} parent=5 // pred_fallthru
        _
      %p683 = scmp.le.s32.totalorder 1, %s30
      %p684 = scmp.lt.s32.totalorder %s30, 5
      %p685 = pnand %p683, %p684
      %p686 = pneg %p685
      // Predicated region
      $region89: #{transformer_discriminator.1} parent=5 // pred_check
        _
      $region90: #{transformer_discriminator.1} parent=5 // pred_check_branch
        %688 = sbr.rel (%p685) target = $region92
      $region91: #{transformer_discriminator.1} parent=5 // pred_region
        %s689 = ssub.s32 %s30, 1
        %s690 = sand.u32 %s191, 1
        %s691 = scalar_lea.sflag [#allocation4], %s690
        %s692 = sand.u32 %s191, 1
        %s693 = smul.addr %s692, 192
        %s694 = scalar_lea.vmem [#allocation3], %s693
        // Predicated region
        $region93: #{transformer_discriminator.1} parent=91 // pred_check
          %p695 = pneg %p204
        $region94: #{transformer_discriminator.1} parent=91 // pred_check_branch
          %697 = sbr.rel (%p695) target = $region96
        $region95: #{transformer_discriminator.1} parent=91 // pred_region
          %698 = dma.done %s691, 3072
        $region96: #{transformer_discriminator.1} parent=91 // pred_fallthru
          _
        %s699 = sand.u32 %s35, 1
        %s700 = scalar_lea.sflag [#allocation6], %s699
        %s701 = sand.u32 %s347, 1
        %s702 = smul.addr %s701, 128
        %s703 = scalar_lea.vmem [#allocation5], %s702
        // Predicated region
        $region97: #{transformer_discriminator.1} parent=91 // pred_check
          %p704 = pneg %p360
        $region98: #{transformer_discriminator.1} parent=91 // pred_check_branch
          %706 = sbr.rel (%p704) target = $region100
        $region99: #{transformer_discriminator.1} parent=91 // pred_region
          %707 = dma.done %s700, 2048
        $region100: #{transformer_discriminator.1} parent=91 // pred_fallthru
          _
        %s708 = sand.u32 %s35, 1
        %s709 = scalar_lea.sflag [#allocation6], %s708
        %s710 = sand.u32 %s399, 1
        %s711 = smul.addr %s710, 128
        %s712 = scalar_lea.vmem [#allocation7], %s711
        // Predicated region
        $region101: #{transformer_discriminator.1} parent=91 // pred_check
          %p713 = pneg %p412
        $region102: #{transformer_discriminator.1} parent=91 // pred_check_branch
          %715 = sbr.rel (%p713) target = $region104
        $region103: #{transformer_discriminator.1} parent=91 // pred_region
          %716 = dma.done %s709, 2048
        $region104: #{transformer_discriminator.1} parent=91 // pred_fallthru
          _
        %p717 = scmp.lt.s32.totalorder %s39, 1
        %s718 = scalar_select %p717, %s39, 1
        %s719 = smul.addr %s718, 8
        %s720 = scalar_lea.vmem %s0, %s719
        %p721 = pneg %p68
        %p722 = pneg %p65
        %s723 = smul.u32 4, %s39
        %p724 = scmp.lt.s32.totalorder %s723, 7
        %s725 = scalar_select %p724, %s723, 7
        %s726 = scalar_lea.vmem %s1, %s725
        %p727 = pneg %p94
        %p728 = pneg %p91
        %p729 = pneg %p115
        %p730 = pneg %p112
        %p731 = pneg %p136
        %p732 = pneg %p133
        %p733 = pneg %p157
        %p734 = pneg %p154
        %p735 = pneg %p178
        %p736 = pneg %p175
        %s737 = sand.u32 %s191, 1
        %s738 = scalar_lea.sflag [#allocation4], %s737
        %s739 = sand.u32 %s191, 1
        %s740 = smul.addr %s739, 192
        %s741 = scalar_lea.vmem [#allocation3], %s740
        %p742 = pneg %p204
        %p743 = pneg %p201
        %p744 = scmp.lt.s32.totalorder %s40, 1
        %s745 = scalar_select %p744, %s40, 1
        %s746 = smul.addr %s745, 3
        %s747 = scalar_lea.vmem %s7, %s746
        %p748 = pneg %p230
        %p749 = pneg %p227
        %p750 = scmp.lt.s32.totalorder %s40, 1
        %s751 = scalar_select %p750, %s40, 1
        %s752 = smul.addr %s751, 16
        %s753 = smul.addr %s752, 4
        %s754 = scalar_lea.vmem %s8, %s753
        %p755 = pneg %p256
        %p756 = pneg %p253
        %p757 = scmp.lt.s32.totalorder %s40, 1
        %s758 = scalar_select %p757, %s40, 1
        %s759 = scalar_lea.vmem %s9, %s758
        %p760 = pneg %p282
        %p761 = pneg %p279
        %p762 = scmp.lt.s32.totalorder %s40, 1
        %s763 = scalar_select %p762, %s40, 1
        %s764 = scalar_lea.vmem %s10, %s763
        %p765 = pneg %p308
        %p766 = pneg %p305
        %p767 = scmp.lt.s32.totalorder %s40, 1
        %s768 = scalar_select %p767, %s40, 1
        %s769 = scalar_lea.vmem %s11, %s768
        %p770 = pneg %p334
        %p771 = pneg %p331
        %s772 = sand.u32 %s35, 1
        %s773 = scalar_lea.sflag [#allocation6], %s772
        %s774 = sand.u32 %s347, 1
        %s775 = smul.addr %s774, 128
        %s776 = scalar_lea.vmem [#allocation5], %s775
        %p777 = pneg %p360
        %p778 = pneg %p357
        %p779 = scmp.lt.s32.totalorder %s40, 1
        %s780 = scalar_select %p779, %s40, 1
        %s781 = smul.addr %s780, 2
        %s782 = scalar_lea.vmem %s13, %s781
        %p783 = pneg %p386
        %p784 = pneg %p383
        %s785 = sand.u32 %s35, 1
        %s786 = scalar_lea.sflag [#allocation6], %s785
        %s787 = sand.u32 %s399, 1
        %s788 = smul.addr %s787, 128
        %s789 = scalar_lea.vmem [#allocation7], %s788
        %p790 = pneg %p412
        %p791 = pneg %p409
        %p792 = scmp.lt.s32.totalorder %s40, 1
        %s793 = scalar_select %p792, %s40, 1
        %s794 = scalar_lea.vmem %s15, %s793
        %p795 = pneg %p438
        %p796 = pneg %p435
        %p797 = scmp.lt.s32.totalorder %s40, 1
        %s798 = scalar_select %p797, %s40, 1
        %s799 = scalar_lea.vmem %s16, %s798
        %p800 = pneg %p464
        %p801 = pneg %p461
        %p802 = scmp.lt.s32.totalorder %s40, 1
        %s803 = scalar_select %p802, %s40, 1
        %s804 = scalar_lea.vmem %s17, %s803
        %p805 = pneg %p490
        %p806 = pneg %p487
        %p807 = pneg %p516
        %p808 = pneg %p513
        %p809 = scmp.lt.s32.totalorder %s39, 1
        %s810 = scalar_select %p809, %s39, 1
        %s811 = smul.addr %s810, 8
        %s812 = scalar_lea.vmem %s18, %s811
        %p813 = scmp.lt.s32.totalorder %s39, 1
        %s814 = scalar_select %p813, %s39, 1
        %s815 = smul.addr %s814, 8
        %s816 = scalar_lea.vmem %s0, %s815
        %s817 = smul.u32 4, %s39
        %p818 = scmp.lt.s32.totalorder %s817, 7
        %s819 = scalar_select %p818, %s817, 7
        %s820 = scalar_lea.vmem %s1, %s819
        %s821 = smul.u32 4, %s39
        %p822 = scmp.lt.s32.totalorder %s40, 1
        %s823 = scalar_select %p822, %s40, 1
        %s824 = smul.addr %s823, 3
        %s825 = scalar_lea.vmem %s7, %s824
        %p826 = scmp.lt.s32.totalorder %s40, 1
        %s827 = scalar_select %p826, %s40, 1
        %s828 = smul.addr %s827, 16
        %s829 = smul.addr %s828, 4
        %s830 = scalar_lea.vmem %s8, %s829
        %p831 = scmp.lt.s32.totalorder %s40, 1
        %s832 = scalar_select %p831, %s40, 1
        %s833 = scalar_lea.vmem %s9, %s832
        %p834 = scmp.lt.s32.totalorder %s40, 1
        %s835 = scalar_select %p834, %s40, 1
        %s836 = scalar_lea.vmem %s10, %s835
        %p837 = scmp.lt.s32.totalorder %s40, 1
        %s838 = scalar_select %p837, %s40, 1
        %s839 = scalar_lea.vmem %s11, %s838
        %p840 = scmp.lt.s32.totalorder %s40, 1
        %s841 = scalar_select %p840, %s40, 1
        %s842 = smul.addr %s841, 2
        %s843 = scalar_lea.vmem %s13, %s842
        %p844 = scmp.lt.s32.totalorder %s40, 1
        %s845 = scalar_select %p844, %s40, 1
        %s846 = scalar_lea.vmem %s15, %s845
        %p847 = scmp.lt.s32.totalorder %s40, 1
        %s848 = scalar_select %p847, %s40, 1
        %s849 = scalar_lea.vmem %s16, %s848
        %p850 = scmp.lt.s32.totalorder %s40, 1
        %s851 = scalar_select %p850, %s40, 1
        %s852 = scalar_lea.vmem %s17, %s851
        %p853 = scmp.lt.s32.totalorder %s39, 1
        %s854 = scalar_select %p853, %s39, 1
        %s855 = smul.addr %s854, 8
        %s856 = scalar_lea.vmem %s18, %s855
        %p858 = scmp.eq.s32.totalorder %s40, 0
        // Predicated region
        $region105: #{transformer_discriminator.1} parent=91 // pred_check
          %p859 = pneg %p858
        $region106: #{transformer_discriminator.1} parent=91 // pred_check_branch
          %861 = sbr.rel (%p859) target = $region108
        $region107: #{transformer_discriminator.1} parent=91 // pred_region
          %v862 = vld [vmem:[%s816] sm:$0xff]
          %v863 = vpack.c.bf16 %v862, %v862
          %v864 = vld [vmem:[%s2] sm:$0x3]
          %v865 = vld [vmem:[%s3] sm:$0x1]
          %v867 = vlaneseq
          %v868 = vshrl.u32 %v867, 7
          %v869 = vsub.s32 0, %v868
          %v870 = vrot.slane %v865, %v869
          %vm872 = vcmask 31744
          %v874 = vsel %vm872, %v863, 0
          %vm876 = vcmask 1041408
          %v878 = vsel %vm876, %v864, 0
          %880 = vmatprep.subr.bf16.mxu0 0
          %881 = vmatpush1.bf16.msra.mxu0 0
          %882 = vmatprep.subr.bf16.mxu0 0
          %883 = vmatpush1.bf16.msra.mxu0 0
          %884 = vmatprep.subr.bf16.mxu0 0
          %885 = vmatpush1.bf16.msra.mxu0 0
          %886 = vmatprep.subr.bf16.mxu0 0
          %887 = vmatpush1.bf16.msra.mxu0 0
          %888 = vmatprep.subr.bf16.mxu0 0
          %889 = vmatpush1.bf16.msra.mxu0 0
          %890 = vmatprep.subr.bf16.mxu0 0
          %891 = vmatpush1.bf16.msra.mxu0 0
          %892 = vmatprep.subr.bf16.mxu0 0
          %893 = vmatpush1.bf16.msra.mxu0 0
          %894 = vmatprep.subr.bf16.mxu0 0
          %895 = vmatpush1.bf16.msra.mxu0 %v878
          %896 = vmatprep.subr.bf16.mxu0 0
          %897 = vmatpush2.bf16.msra.mxu0 0
          %898 = vmatprep.subr.bf16.mxu0 0
          %899 = vmatpush2.bf16.msra.mxu0 0
          %900 = vmatprep.subr.bf16.mxu0 0
          %901 = vmatpush2.bf16.msra.mxu0 0
          %902 = vmatprep.subr.bf16.mxu0 0
          %903 = vmatpush2.bf16.msra.mxu0 0
          %904 = vmatprep.subr.bf16.mxu0 0
          %905 = vmatpush2.bf16.msra.mxu0 0
          %906 = vmatprep.subr.bf16.mxu0 0
          %907 = vmatpush2.bf16.msra.mxu0 0
          %908 = vmatprep.subr.bf16.mxu0 0
          %909 = vmatpush2.bf16.msra.mxu0 0
          %910 = vmatprep.subr.bf16.mxu0 0
          %911 = vmatpush2.bf16.msra.mxu0 0
          %912 = vmatprep.mubr.bf16.mxu0 0
          %913 = vmatmul.mubr.bf16.gmra.mxu0 %v874
          %v914 = vpop.f32.mrf.mxu0
          %v915 = vadd.f32 %v870, %v914
          %v916 = vpop.f32.mrf.mxu0
          %v917 = vpop.f32.mrf.mxu0
          %v918 = vpop.f32.mrf.mxu0
          %919 = vdwg.mxu0
          %v921 = vcombine.high %v915, %v915
          %v923 = vunpack.c.l.s4 1983009808
          %v924 = vunpack.c.0.s8 %v923
          %v925 = vlaneseq
          %v926 = vshrl.u32 %v925, 7
          %v927 = vsub.s32 %v924, %v926
          %v928 = vrot.slane %v915, %v927
          %v930 = vunpack.c.l.s4 1983009808
          %v931 = vunpack.c.0.s8 %v930
          %v932 = vlaneseq
          %v933 = vshrl.u32 %v932, 7
          %v934 = vsub.s32 %v931, %v933
          %v935 = vrot.slane %v921, %v934
          %v936 = vcombine.high %v928, %v928
          %v937 = vcombine.high %v935, %v935
          %v942 = vld [vmem:[%s820] sm:$0x1]
          %v943 = vld [vmem:[%s820 + $0x1] sm:$0x1]
          %v944 = vld [vmem:[%s820 + $0x2] sm:$0x1]
          %v945 = vld [vmem:[%s820 + $0x3] sm:$0x1]
          %v950 = vlaneseq
          %v951 = vshrl.u32 %v950, 7
          %v952 = vsub.s32 0, %v951
          %v953 = vrot.slane %v942, %v952
          %v954 = vlaneseq
          %v955 = vshrl.u32 %v954, 7
          %v956 = vsub.s32 0, %v955
          %v957 = vrot.slane %v943, %v956
          %v958 = vlaneseq
          %v959 = vshrl.u32 %v958, 7
          %v960 = vsub.s32 0, %v959
          %v961 = vrot.slane %v944, %v960
          %v962 = vlaneseq
          %v963 = vshrl.u32 %v962, 7
          %v964 = vsub.s32 0, %v963
          %v965 = vrot.slane %v945, %v964
          %v970 = vadd.f32 %v928, %v953
          %v971 = vadd.f32 %v936, %v957
          %v972 = vadd.f32 %v935, %v961
          %v973 = vadd.f32 %v937, %v965
          %v978 = vcombine.low %v970, %v971
          %v979 = vcombine.low %v972, %v973
          %v981 = vunpack.c.l.s4 1983009808
          %v982 = vunpack.c.0.s8 %v981
          %v983 = vlaneseq
          %v984 = vshrl.u32 %v983, 7
          %v985 = vsub.s32 %v982, %v984
          %v986 = vrot.slane %v978, %v985
          %v988 = vunpack.c.l.s4 1983009808
          %v989 = vunpack.c.0.s8 %v988
          %v990 = vlaneseq
          %v991 = vshrl.u32 %v990, 7
          %v992 = vsub.s32 %v989, %v991
          %v993 = vrot.slane %v979, %v992
          %v994 = vcombine.low %v986, %v993
          %996 = vst [vmem:[#allocation2] sm:$0xff] %v994
        $region108: #{transformer_discriminator.1} parent=91 // pred_fallthru
          _
        %v997 = vld [vmem:[#allocation2] sm:$0xff]
        %v998 = vpack.c.bf16 %v997, %v997
        %v999 = vld [vmem:[%s694] sm:$0xff]
        %v1000 = vld [vmem:[%s694 + $0x8] sm:$0xf]
        %v1001 = vld [vmem:[%s694 + $0xc] sm:$0xff]
        %v1002 = vld [vmem:[%s694 + $0x14] sm:$0xf]
        %v1003 = vld [vmem:[%s694 + $0x18] sm:$0xff]
        %v1004 = vld [vmem:[%s694 + $0x20] sm:$0xf]
        %v1005 = vld [vmem:[%s694 + $0x24] sm:$0xff]
        %v1006 = vld [vmem:[%s694 + $0x2c] sm:$0xf]
        %v1007 = vld [vmem:[%s694 + $0x30] sm:$0xff]
        %v1008 = vld [vmem:[%s694 + $0x38] sm:$0xf]
        %v1009 = vld [vmem:[%s694 + $0x3c] sm:$0xff]
        %v1010 = vld [vmem:[%s694 + $0x44] sm:$0xf]
        %v1011 = vld [vmem:[%s694 + $0x48] sm:$0xff]
        %v1012 = vld [vmem:[%s694 + $0x50] sm:$0xf]
        %v1013 = vld [vmem:[%s694 + $0x54] sm:$0xff]
        %v1014 = vld [vmem:[%s694 + $0x5c] sm:$0xf]
        %v1015 = vld [vmem:[%s694 + $0x60] sm:$0xff]
        %v1016 = vld [vmem:[%s694 + $0x68] sm:$0xf]
        %v1017 = vld [vmem:[%s694 + $0x6c] sm:$0xff]
        %v1018 = vld [vmem:[%s694 + $0x74] sm:$0xf]
        %v1019 = vld [vmem:[%s694 + $0x78] sm:$0xff]
        %v1020 = vld [vmem:[%s694 + $0x80] sm:$0xf]
        %v1021 = vld [vmem:[%s694 + $0x84] sm:$0xff]
        %v1022 = vld [vmem:[%s694 + $0x8c] sm:$0xf]
        %v1023 = vld [vmem:[%s694 + $0x90] sm:$0xff]
        %v1024 = vld [vmem:[%s694 + $0x98] sm:$0xf]
        %v1025 = vld [vmem:[%s694 + $0x9c] sm:$0xff]
        %v1026 = vld [vmem:[%s694 + $0xa4] sm:$0xf]
        %v1027 = vld [vmem:[%s694 + $0xa8] sm:$0xff]
        %v1028 = vld [vmem:[%s694 + $0xb0] sm:$0xf]
        %v1029 = vld [vmem:[%s694 + $0xb4] sm:$0xff]
        %v1030 = vld [vmem:[%s694 + $0xbc] sm:$0xf]
        %v1031 = vld [vmem:[%s825] sm:$0x7]
        %v1033 = vlaneseq
        %v1034 = vshrl.u32 %v1033, 7
        %v1035 = vsub.s32 0, %v1034
        %v1036 = vrot.slane %v1031, %v1035
        %v1037 = vlaneseq
        %v1038 = vshrl.u32 %v1037, 7
        %v1039 = vsub.s32 1, %v1038
        %v1040 = vrot.slane %v1031, %v1039
        %v1041 = vlaneseq
        %v1042 = vshrl.u32 %v1041, 7
        %v1043 = vsub.s32 2, %v1042
        %v1044 = vrot.slane %v1031, %v1043
        %v1080 = vunpack.c.l.b16 %v999
        %v1081 = vunpack.c.h.b16 %v999
        %v1082 = vunpack.c.l.b16 %v1000
        %v1083 = vunpack.c.l.b16 %v1001
        %v1084 = vunpack.c.h.b16 %v1001
        %v1085 = vunpack.c.l.b16 %v1002
        %v1086 = vunpack.c.l.b16 %v1003
        %v1087 = vunpack.c.h.b16 %v1003
        %v1088 = vunpack.c.l.b16 %v1004
        %v1089 = vunpack.c.l.b16 %v1005
        %v1090 = vunpack.c.h.b16 %v1005
        %v1091 = vunpack.c.l.b16 %v1006
        %v1092 = vunpack.c.l.b16 %v1007
        %v1093 = vunpack.c.h.b16 %v1007
        %v1094 = vunpack.c.l.b16 %v1008
        %v1095 = vunpack.c.l.b16 %v1009
        %v1096 = vunpack.c.h.b16 %v1009
        %v1097 = vunpack.c.l.b16 %v1010
        %v1098 = vunpack.c.l.b16 %v1011
        %v1099 = vunpack.c.h.b16 %v1011
        %v1100 = vunpack.c.l.b16 %v1012
        %v1101 = vunpack.c.l.b16 %v1013
        %v1102 = vunpack.c.h.b16 %v1013
        %v1103 = vunpack.c.l.b16 %v1014
        %v1104 = vunpack.c.l.b16 %v1015
        %v1105 = vunpack.c.h.b16 %v1015
        %v1106 = vunpack.c.l.b16 %v1016
        %v1107 = vunpack.c.l.b16 %v1017
        %v1108 = vunpack.c.h.b16 %v1017
        %v1109 = vunpack.c.l.b16 %v1018
        %v1110 = vunpack.c.l.b16 %v1019
        %v1111 = vunpack.c.h.b16 %v1019
        %v1112 = vunpack.c.l.b16 %v1020
        %v1113 = vunpack.c.l.b16 %v1021
        %v1114 = vunpack.c.h.b16 %v1021
        %v1115 = vunpack.c.l.b16 %v1022
        %v1116 = vunpack.c.l.b16 %v1023
        %v1117 = vunpack.c.h.b16 %v1023
        %v1118 = vunpack.c.l.b16 %v1024
        %v1119 = vunpack.c.l.b16 %v1025
        %v1120 = vunpack.c.h.b16 %v1025
        %v1121 = vunpack.c.l.b16 %v1026
        %v1122 = vunpack.c.l.b16 %v1027
        %v1123 = vunpack.c.h.b16 %v1027
        %v1124 = vunpack.c.l.b16 %v1028
        %v1125 = vunpack.c.l.b16 %v1029
        %v1126 = vunpack.c.h.b16 %v1029
        %v1127 = vunpack.c.l.b16 %v1030
        %v1128 = vpack.c.b16 %v1083, %v1080
        %v1129 = vpack.c.b16 %v1084, %v1081
        %v1130 = vpack.c.b16 %v1085, %v1082
        %v1131 = vpack.c.b16 %v1089, %v1086
        %v1132 = vpack.c.b16 %v1090, %v1087
        %v1133 = vpack.c.b16 %v1091, %v1088
        %v1134 = vpack.c.b16 %v1095, %v1092
        %v1135 = vpack.c.b16 %v1096, %v1093
        %v1136 = vpack.c.b16 %v1097, %v1094
        %v1137 = vpack.c.b16 %v1101, %v1098
        %v1138 = vpack.c.b16 %v1102, %v1099
        %v1139 = vpack.c.b16 %v1103, %v1100
        %v1140 = vpack.c.b16 %v1107, %v1104
        %v1141 = vpack.c.b16 %v1108, %v1105
        %v1142 = vpack.c.b16 %v1109, %v1106
        %v1143 = vpack.c.b16 %v1113, %v1110
        %v1144 = vpack.c.b16 %v1114, %v1111
        %v1145 = vpack.c.b16 %v1115, %v1112
        %v1146 = vpack.c.b16 %v1119, %v1116
        %v1147 = vpack.c.b16 %v1120, %v1117
        %v1148 = vpack.c.b16 %v1121, %v1118
        %v1149 = vpack.c.b16 %v1125, %v1122
        %v1150 = vpack.c.b16 %v1126, %v1123
        %v1151 = vpack.c.b16 %v1127, %v1124
        %1176 = vmatprep.subr.bf16.mxu0 %v1150
        %1177 = vmatpush1.bf16.msra.mxu0 %v1149
        %1178 = vmatprep.subr.bf16.mxu0 %v1147
        %1179 = vmatpush1.bf16.msra.mxu0 %v1146
        %1180 = vmatprep.subr.bf16.mxu0 %v1144
        %1181 = vmatpush1.bf16.msra.mxu0 %v1143
        %1182 = vmatprep.subr.bf16.mxu0 %v1141
        %1183 = vmatpush1.bf16.msra.mxu0 %v1140
        %1184 = vmatprep.subr.bf16.mxu0 %v1138
        %1185 = vmatpush1.bf16.msra.mxu0 %v1137
        %1186 = vmatprep.subr.bf16.mxu0 %v1135
        %1187 = vmatpush1.bf16.msra.mxu0 %v1134
        %1188 = vmatprep.subr.bf16.mxu0 %v1132
        %1189 = vmatpush1.bf16.msra.mxu0 %v1131
        %1190 = vmatprep.subr.bf16.mxu0 %v1129
        %1191 = vmatpush1.bf16.msra.mxu0 %v1128
        %1192 = vmatprep.subr.bf16.mxu0 0
        %1193 = vmatpush2.bf16.msra.mxu0 0
        %1194 = vmatprep.subr.bf16.mxu0 0
        %1195 = vmatpush2.bf16.msra.mxu0 0
        %1196 = vmatprep.subr.bf16.mxu0 0
        %1197 = vmatpush2.bf16.msra.mxu0 0
        %1198 = vmatprep.subr.bf16.mxu0 0
        %1199 = vmatpush2.bf16.msra.mxu0 0
        %1200 = vmatprep.subr.bf16.mxu0 0
        %1201 = vmatpush2.bf16.msra.mxu0 0
        %1202 = vmatprep.subr.bf16.mxu0 0
        %1203 = vmatpush2.bf16.msra.mxu0 0
        %1204 = vmatprep.subr.bf16.mxu0 0
        %1205 = vmatpush2.bf16.msra.mxu0 0
        %1206 = vmatprep.subr.bf16.mxu0 0
        %1207 = vmatpush2.bf16.msra.mxu0 0
        %1208 = vmatprep.mubr.bf16.mxu0 0
        %1209 = vmatmul.mubr.bf16.gmra.mxu0 %v998
        %v1210 = vpop.f32.mrf.mxu0
        %v1211 = vadd.f32 %v1036, %v1210
        %v1212 = vpop.f32.mrf.mxu0
        %v1213 = vadd.f32 %v1040, %v1212
        %v1214 = vpop.f32.mrf.mxu0
        %v1215 = vpop.f32.mrf.mxu0
        %1216 = vdwg.mxu0
        %1217 = vmatprep.subr.bf16.mxu0 0
        %1218 = vmatpush1.bf16.msra.mxu0 %v1151
        %1219 = vmatprep.subr.bf16.mxu0 0
        %1220 = vmatpush1.bf16.msra.mxu0 %v1148
        %1221 = vmatprep.subr.bf16.mxu0 0
        %1222 = vmatpush1.bf16.msra.mxu0 %v1145
        %1223 = vmatprep.subr.bf16.mxu0 0
        %1224 = vmatpush1.bf16.msra.mxu0 %v1142
        %1225 = vmatprep.subr.bf16.mxu0 0
        %1226 = vmatpush1.bf16.msra.mxu0 %v1139
        %1227 = vmatprep.subr.bf16.mxu0 0
        %1228 = vmatpush1.bf16.msra.mxu0 %v1136
        %1229 = vmatprep.subr.bf16.mxu0 0
        %1230 = vmatpush1.bf16.msra.mxu0 %v1133
        %1231 = vmatprep.subr.bf16.mxu0 0
        %1232 = vmatpush1.bf16.msra.mxu0 %v1130
        %1233 = vmatprep.subr.bf16.mxu0 0
        %1234 = vmatpush2.bf16.msra.mxu0 0
        %1235 = vmatprep.subr.bf16.mxu0 0
        %1236 = vmatpush2.bf16.msra.mxu0 0
        %1237 = vmatprep.subr.bf16.mxu0 0
        %1238 = vmatpush2.bf16.msra.mxu0 0
        %1239 = vmatprep.subr.bf16.mxu0 0
        %1240 = vmatpush2.bf16.msra.mxu0 0
        %1241 = vmatprep.subr.bf16.mxu0 0
        %1242 = vmatpush2.bf16.msra.mxu0 0
        %1243 = vmatprep.subr.bf16.mxu0 0
        %1244 = vmatpush2.bf16.msra.mxu0 0
        %1245 = vmatprep.subr.bf16.mxu0 0
        %1246 = vmatpush2.bf16.msra.mxu0 0
        %1247 = vmatprep.subr.bf16.mxu0 0
        %1248 = vmatpush2.bf16.msra.mxu0 0
        %1249 = vmatprep.mubr.bf16.mxu0 0
        %1250 = vmatmul.mubr.bf16.gmra.mxu0 %v998
        %v1251 = vpop.f32.mrf.mxu0
        %v1252 = vadd.f32 %v1044, %v1251
        %v1253 = vpop.f32.mrf.mxu0
        %v1254 = vpop.f32.mrf.mxu0
        %v1255 = vpop.f32.mrf.mxu0
        %1256 = vdwg.mxu0
        %v1258 = vcombine.high %v1211, %v1211
        %v1260 = vunpack.c.l.s4 1966171168
        %v1261 = vunpack.c.0.s8 %v1260
        %v1262 = vlaneseq
        %v1263 = vshrl.u32 %v1262, 7
        %v1264 = vsub.s32 %v1261, %v1263
        %v1265 = vrot.slane %v1211, %v1264
        %v1267 = vunpack.c.l.s4 1966171168
        %v1268 = vunpack.c.0.s8 %v1267
        %v1269 = vlaneseq
        %v1270 = vshrl.u32 %v1269, 7
        %v1271 = vsub.s32 %v1268, %v1270
        %v1272 = vrot.slane %v1258, %v1271
        %v1273 = vcombine.high %v1265, %v1265
        %v1274 = vcombine.high %v1272, %v1272
        %v1276 = vunpack.c.l.s4 1966171168
        %v1277 = vunpack.c.0.s8 %v1276
        %v1278 = vlaneseq
        %v1279 = vshrl.u32 %v1278, 7
        %v1280 = vsub.s32 %v1277, %v1279
        %v1281 = vrot.slane %v1265, %v1280
        %v1283 = vunpack.c.l.s4 1966171168
        %v1284 = vunpack.c.0.s8 %v1283
        %v1285 = vlaneseq
        %v1286 = vshrl.u32 %v1285, 7
        %v1287 = vsub.s32 %v1284, %v1286
        %v1288 = vrot.slane %v1272, %v1287
        %v1290 = vunpack.c.l.s4 1966171168
        %v1291 = vunpack.c.0.s8 %v1290
        %v1292 = vlaneseq
        %v1293 = vshrl.u32 %v1292, 7
        %v1294 = vsub.s32 %v1291, %v1293
        %v1295 = vrot.slane %v1273, %v1294
        %v1297 = vunpack.c.l.s4 1966171168
        %v1298 = vunpack.c.0.s8 %v1297
        %v1299 = vlaneseq
        %v1300 = vshrl.u32 %v1299, 7
        %v1301 = vsub.s32 %v1298, %v1300
        %v1302 = vrot.slane %v1274, %v1301
        %v1303 = vcombine.high %v1281, %v1281
        %v1304 = vcombine.high %v1288, %v1288
        %v1305 = vcombine.high %v1295, %v1295
        %v1306 = vcombine.high %v1302, %v1302
        %v1308 = vcombine.high %v1213, %v1213
        %v1310 = vunpack.c.l.s4 1983009808
        %v1311 = vunpack.c.0.s8 %v1310
        %v1312 = vlaneseq
        %v1313 = vshrl.u32 %v1312, 7
        %v1314 = vsub.s32 %v1311, %v1313
        %v1315 = vrot.slane %v1213, %v1314
        %v1317 = vunpack.c.l.s4 1983009808
        %v1318 = vunpack.c.0.s8 %v1317
        %v1319 = vlaneseq
        %v1320 = vshrl.u32 %v1319, 7
        %v1321 = vsub.s32 %v1318, %v1320
        %v1322 = vrot.slane %v1308, %v1321
        %v1323 = vcombine.high %v1315, %v1315
        %v1324 = vcombine.high %v1322, %v1322
        %v1329 = vlaneseq
        %v1330 = vshrl.u32 %v1329, 7
        %v1331 = vsub.s32 0, %v1330
        %v1332 = vrot.slane %v1281, %v1331
        %v1333 = vlaneseq
        %v1334 = vshrl.u32 %v1333, 7
        %v1335 = vsub.s32 0, %v1334
        %v1336 = vrot.slane %v1295, %v1335
        %v1337 = vlaneseq
        %v1338 = vshrl.u32 %v1337, 7
        %v1339 = vsub.s32 0, %v1338
        %v1340 = vrot.slane %v1303, %v1339
        %v1341 = vlaneseq
        %v1342 = vshrl.u32 %v1341, 7
        %v1343 = vsub.s32 0, %v1342
        %v1344 = vrot.slane %v1305, %v1343
        %v1345 = vlaneseq
        %v1346 = vshrl.u32 %v1345, 7
        %v1347 = vsub.s32 0, %v1346
        %v1348 = vrot.slane %v1288, %v1347
        %v1349 = vlaneseq
        %v1350 = vshrl.u32 %v1349, 7
        %v1351 = vsub.s32 0, %v1350
        %v1352 = vrot.slane %v1302, %v1351
        %v1353 = vlaneseq
        %v1354 = vshrl.u32 %v1353, 7
        %v1355 = vsub.s32 0, %v1354
        %v1356 = vrot.slane %v1304, %v1355
        %v1357 = vlaneseq
        %v1358 = vshrl.u32 %v1357, 7
        %v1359 = vsub.s32 0, %v1358
        %v1360 = vrot.slane %v1306, %v1359
        %v1369 = vmul.f32 %v1332, %v1315
        %v1370 = vmul.f32 %v1336, %v1315
        %v1371 = vmul.f32 %v1340, %v1323
        %v1372 = vmul.f32 %v1344, %v1323
        %v1373 = vmul.f32 %v1348, %v1322
        %v1374 = vmul.f32 %v1352, %v1322
        %v1375 = vmul.f32 %v1356, %v1324
        %v1376 = vmul.f32 %v1360, %v1324
        %v1377 = vld [vmem:[%s4] sm:$0xff]
        %v1378 = vld [vmem:[%s4 + $0x8] sm:$0xff]
        %v1379 = vld [vmem:[%s4 + $0x10] sm:$0xff]
        %v1380 = vld [vmem:[%s4 + $0x18] sm:$0xff]
        %v1381 = vld [vmem:[%s4 + $0x20] sm:$0xff]
        %v1382 = vld [vmem:[%s4 + $0x28] sm:$0xff]
        %v1383 = vld [vmem:[%s4 + $0x30] sm:$0xff]
        %v1384 = vld [vmem:[%s4 + $0x38] sm:$0xff]
        %v1385 = vld [vmem:[%s4 + $0x40] sm:$0xff]
        %v1386 = vld [vmem:[%s4 + $0x48] sm:$0xff]
        %v1387 = vld [vmem:[%s4 + $0x50] sm:$0xff]
        %v1388 = vld [vmem:[%s4 + $0x58] sm:$0xff]
        %v1389 = vld [vmem:[%s4 + $0x60] sm:$0xff]
        %v1390 = vld [vmem:[%s4 + $0x68] sm:$0xff]
        %v1391 = vld [vmem:[%s4 + $0x70] sm:$0xff]
        %v1392 = vld [vmem:[%s4 + $0x78] sm:$0xff]
        %v1401 = vcombine.low %v1369, %v1370
        %v1402 = vcombine.low %v1371, %v1372
        %v1404 = vunpack.c.l.s4 1983009808
        %v1405 = vunpack.c.0.s8 %v1404
        %v1406 = vlaneseq
        %v1407 = vshrl.u32 %v1406, 7
        %v1408 = vsub.s32 %v1405, %v1407
        %v1409 = vrot.slane %v1401, %v1408
        %v1411 = vunpack.c.l.s4 1983009808
        %v1412 = vunpack.c.0.s8 %v1411
        %v1413 = vlaneseq
        %v1414 = vshrl.u32 %v1413, 7
        %v1415 = vsub.s32 %v1412, %v1414
        %v1416 = vrot.slane %v1402, %v1415
        %v1417 = vcombine.low %v1409, %v1416
        %v1418 = vcombine.low %v1373, %v1374
        %v1419 = vcombine.low %v1375, %v1376
        %v1421 = vunpack.c.l.s4 1983009808
        %v1422 = vunpack.c.0.s8 %v1421
        %v1423 = vlaneseq
        %v1424 = vshrl.u32 %v1423, 7
        %v1425 = vsub.s32 %v1422, %v1424
        %v1426 = vrot.slane %v1418, %v1425
        %v1428 = vunpack.c.l.s4 1983009808
        %v1429 = vunpack.c.0.s8 %v1428
        %v1430 = vlaneseq
        %v1431 = vshrl.u32 %v1430, 7
        %v1432 = vsub.s32 %v1429, %v1431
        %v1433 = vrot.slane %v1419, %v1432
        %v1434 = vcombine.low %v1426, %v1433
        %1437 = vmatprep.subr.mxu0 0.0
        %1438 = vmatpush1.msra.mxu0 %v1392
        %1439 = vmatprep.subr.mxu0 0.0
        %1440 = vmatpush1.msra.mxu0 %v1391
        %1441 = vmatprep.subr.mxu0 0.0
        %1442 = vmatpush1.msra.mxu0 %v1390
        %1443 = vmatprep.subr.mxu0 0.0
        %1444 = vmatpush1.msra.mxu0 %v1389
        %1445 = vmatprep.subr.mxu0 0.0
        %1446 = vmatpush1.msra.mxu0 %v1388
        %1447 = vmatprep.subr.mxu0 0.0
        %1448 = vmatpush1.msra.mxu0 %v1387
        %1449 = vmatprep.subr.mxu0 0.0
        %1450 = vmatpush1.msra.mxu0 %v1386
        %1451 = vmatprep.subr.mxu0 0.0
        %1452 = vmatpush1.msra.mxu0 %v1385
        %1453 = vmatprep.subr.mxu0 0.0
        %1454 = vmatpush1.msra.mxu0 %v1384
        %1455 = vmatprep.subr.mxu0 0.0
        %1456 = vmatpush1.msra.mxu0 %v1383
        %1457 = vmatprep.subr.mxu0 0.0
        %1458 = vmatpush1.msra.mxu0 %v1382
        %1459 = vmatprep.subr.mxu0 0.0
        %1460 = vmatpush1.msra.mxu0 %v1381
        %1461 = vmatprep.subr.mxu0 0.0
        %1462 = vmatpush1.msra.mxu0 %v1380
        %1463 = vmatprep.subr.mxu0 0.0
        %1464 = vmatpush1.msra.mxu0 %v1379
        %1465 = vmatprep.subr.mxu0 0.0
        %1466 = vmatpush1.msra.mxu0 %v1378
        %1467 = vmatprep.subr.mxu0 0.0
        %1468 = vmatpush1.msra.mxu0 %v1377
        %1469 = vmatprep.subr.mxu0 0.0
        %1470 = vmatpush2.msra.mxu0 0.0
        %1471 = vmatprep.subr.mxu0 0.0
        %1472 = vmatpush2.msra.mxu0 0.0
        %1473 = vmatprep.subr.mxu0 0.0
        %1474 = vmatpush2.msra.mxu0 0.0
        %1475 = vmatprep.subr.mxu0 0.0
        %1476 = vmatpush2.msra.mxu0 0.0
        %1477 = vmatprep.subr.mxu0 0.0
        %1478 = vmatpush2.msra.mxu0 0.0
        %1479 = vmatprep.subr.mxu0 0.0
        %1480 = vmatpush2.msra.mxu0 0.0
        %1481 = vmatprep.subr.mxu0 0.0
        %1482 = vmatpush2.msra.mxu0 0.0
        %1483 = vmatprep.subr.mxu0 0.0
        %1484 = vmatpush2.msra.mxu0 0.0
        %1485 = vmatprep.subr.mxu0 0.0
        %1486 = vmatpush2.msra.mxu0 0.0
        %1487 = vmatprep.subr.mxu0 0.0
        %1488 = vmatpush2.msra.mxu0 0.0
        %1489 = vmatprep.subr.mxu0 0.0
        %1490 = vmatpush2.msra.mxu0 0.0
        %1491 = vmatprep.subr.mxu0 0.0
        %1492 = vmatpush2.msra.mxu0 0.0
        %1493 = vmatprep.subr.mxu0 0.0
        %1494 = vmatpush2.msra.mxu0 0.0
        %1495 = vmatprep.subr.mxu0 0.0
        %1496 = vmatpush2.msra.mxu0 0.0
        %1497 = vmatprep.subr.mxu0 0.0
        %1498 = vmatpush2.msra.mxu0 0.0
        %1499 = vmatprep.subr.mxu0 0.0
        %1500 = vmatpush2.msra.mxu0 0.0
        %1501 = vmatprep.mubr.f32.mxu0 0.0
        %1502 = vmatmul.mubr.f32.gmra.mxu0 %v1417
        %v1503 = vpop.f32.mrf.mxu0
        %v1504 = vadd.f32 0.0, %v1503
        %v1505 = vpop.f32.mrf.mxu0
        %1506 = vmatprep.mubr.f32.mxu0 0.0
        %1507 = vmatmul.mubr.f32.gmra.mxu0 %v1434
        %v1508 = vpop.f32.mrf.mxu0
        %v1509 = vadd.f32 0.0, %v1508
        %v1510 = vpop.f32.mrf.mxu0
        %1511 = vdwg.mxu0
        %v1514 = vcombine.high %v1504, %v1504
        %v1516 = vunpack.c.l.s4 1983009808
        %v1517 = vunpack.c.0.s8 %v1516
        %v1518 = vlaneseq
        %v1519 = vshrl.u32 %v1518, 7
        %v1520 = vsub.s32 %v1517, %v1519
        %v1521 = vrot.slane %v1504, %v1520
        %v1523 = vunpack.c.l.s4 1983009808
        %v1524 = vunpack.c.0.s8 %v1523
        %v1525 = vlaneseq
        %v1526 = vshrl.u32 %v1525, 7
        %v1527 = vsub.s32 %v1524, %v1526
        %v1528 = vrot.slane %v1514, %v1527
        %v1529 = vcombine.high %v1521, %v1521
        %v1530 = vcombine.high %v1528, %v1528
        %v1531 = vcombine.high %v1509, %v1509
        %v1533 = vunpack.c.l.s4 1983009808
        %v1534 = vunpack.c.0.s8 %v1533
        %v1535 = vlaneseq
        %v1536 = vshrl.u32 %v1535, 7
        %v1537 = vsub.s32 %v1534, %v1536
        %v1538 = vrot.slane %v1509, %v1537
        %v1540 = vunpack.c.l.s4 1983009808
        %v1541 = vunpack.c.0.s8 %v1540
        %v1542 = vlaneseq
        %v1543 = vshrl.u32 %v1542, 7
        %v1544 = vsub.s32 %v1541, %v1543
        %v1545 = vrot.slane %v1531, %v1544
        %v1546 = vcombine.high %v1538, %v1538
        %v1547 = vcombine.high %v1545, %v1545
        %vm1556 = vcmask 25600
        %v1557 = vsel %vm1556, %v1521, -inf
        %v1558 = vrot.slane %v1557, 4
        %v1559 = vmax.f32 %v1557, %v1558
        %v1560 = vrot.slane %v1559, 2
        %v1561 = vmax.f32 %v1559, %v1560
        %v1562 = vrot.slane %v1561, 1
        %v1563 = vmax.f32 %v1561, %v1562
        %v1564 = vsel %vm1556, %v1529, -inf
        %v1565 = vrot.slane %v1564, 4
        %v1566 = vmax.f32 %v1564, %v1565
        %v1567 = vrot.slane %v1566, 2
        %v1568 = vmax.f32 %v1566, %v1567
        %v1569 = vrot.slane %v1568, 1
        %v1570 = vmax.f32 %v1568, %v1569
        %v1571 = vsel %vm1556, %v1528, -inf
        %v1572 = vrot.slane %v1571, 4
        %v1573 = vmax.f32 %v1571, %v1572
        %v1574 = vrot.slane %v1573, 2
        %v1575 = vmax.f32 %v1573, %v1574
        %v1576 = vrot.slane %v1575, 1
        %v1577 = vmax.f32 %v1575, %v1576
        %v1578 = vsel %vm1556, %v1530, -inf
        %v1579 = vrot.slane %v1578, 4
        %v1580 = vmax.f32 %v1578, %v1579
        %v1581 = vrot.slane %v1580, 2
        %v1582 = vmax.f32 %v1580, %v1581
        %v1583 = vrot.slane %v1582, 1
        %v1584 = vmax.f32 %v1582, %v1583
        %v1585 = vsel %vm1556, %v1538, -inf
        %v1586 = vrot.slane %v1585, 4
        %v1587 = vmax.f32 %v1585, %v1586
        %v1588 = vrot.slane %v1587, 2
        %v1589 = vmax.f32 %v1587, %v1588
        %v1590 = vrot.slane %v1589, 1
        %v1591 = vmax.f32 %v1589, %v1590
        %v1592 = vsel %vm1556, %v1546, -inf
        %v1593 = vrot.slane %v1592, 4
        %v1594 = vmax.f32 %v1592, %v1593
        %v1595 = vrot.slane %v1594, 2
        %v1596 = vmax.f32 %v1594, %v1595
        %v1597 = vrot.slane %v1596, 1
        %v1598 = vmax.f32 %v1596, %v1597
        %v1599 = vsel %vm1556, %v1545, -inf
        %v1600 = vrot.slane %v1599, 4
        %v1601 = vmax.f32 %v1599, %v1600
        %v1602 = vrot.slane %v1601, 2
        %v1603 = vmax.f32 %v1601, %v1602
        %v1604 = vrot.slane %v1603, 1
        %v1605 = vmax.f32 %v1603, %v1604
        %v1606 = vsel %vm1556, %v1547, -inf
        %v1607 = vrot.slane %v1606, 4
        %v1608 = vmax.f32 %v1606, %v1607
        %v1609 = vrot.slane %v1608, 2
        %v1610 = vmax.f32 %v1608, %v1609
        %v1611 = vrot.slane %v1610, 1
        %v1612 = vmax.f32 %v1610, %v1611
        %v1613 = vsub.f32 %v1521, %v1563
        %v1614 = vsub.f32 %v1529, %v1570
        %v1615 = vsub.f32 %v1528, %v1577
        %v1616 = vsub.f32 %v1530, %v1584
        %v1617 = vsub.f32 %v1538, %v1591
        %v1618 = vsub.f32 %v1546, %v1598
        %v1619 = vsub.f32 %v1545, %v1605
        %v1620 = vsub.f32 %v1547, %v1612
        %v1621 = vmul.f32 %v1613, 1.442695
        %v1622 = vpow.pop %v1621
        %v1623 = vmul.f32 %v1614, 1.442695
        %v1624 = vpow.pop %v1623
        %v1625 = vmul.f32 %v1615, 1.442695
        %v1626 = vpow.pop %v1625
        %v1627 = vmul.f32 %v1616, 1.442695
        %v1628 = vpow.pop %v1627
        %v1629 = vmul.f32 %v1617, 1.442695
        %v1630 = vpow.pop %v1629
        %v1631 = vmul.f32 %v1618, 1.442695
        %v1632 = vpow.pop %v1631
        %v1633 = vmul.f32 %v1619, 1.442695
        %v1634 = vpow.pop %v1633
        %v1635 = vmul.f32 %v1620, 1.442695
        %v1636 = vpow.pop %v1635
        %v1637 = vsel %vm1556, %v1622, 0.0
        %v1638 = vrot.slane %v1637, 4
        %v1639 = vadd.f32 %v1637, %v1638
        %v1640 = vrot.slane %v1639, 2
        %v1641 = vadd.f32 %v1639, %v1640
        %v1642 = vrot.slane %v1641, 1
        %v1643 = vadd.f32 %v1641, %v1642
        %v1644 = vsel %vm1556, %v1624, 0.0
        %v1645 = vrot.slane %v1644, 4
        %v1646 = vadd.f32 %v1644, %v1645
        %v1647 = vrot.slane %v1646, 2
        %v1648 = vadd.f32 %v1646, %v1647
        %v1649 = vrot.slane %v1648, 1
        %v1650 = vadd.f32 %v1648, %v1649
        %v1651 = vsel %vm1556, %v1626, 0.0
        %v1652 = vrot.slane %v1651, 4
        %v1653 = vadd.f32 %v1651, %v1652
        %v1654 = vrot.slane %v1653, 2
        %v1655 = vadd.f32 %v1653, %v1654
        %v1656 = vrot.slane %v1655, 1
        %v1657 = vadd.f32 %v1655, %v1656
        %v1658 = vsel %vm1556, %v1628, 0.0
        %v1659 = vrot.slane %v1658, 4
        %v1660 = vadd.f32 %v1658, %v1659
        %v1661 = vrot.slane %v1660, 2
        %v1662 = vadd.f32 %v1660, %v1661
        %v1663 = vrot.slane %v1662, 1
        %v1664 = vadd.f32 %v1662, %v1663
        %v1665 = vsel %vm1556, %v1630, 0.0
        %v1666 = vrot.slane %v1665, 4
        %v1667 = vadd.f32 %v1665, %v1666
        %v1668 = vrot.slane %v1667, 2
        %v1669 = vadd.f32 %v1667, %v1668
        %v1670 = vrot.slane %v1669, 1
        %v1671 = vadd.f32 %v1669, %v1670
        %v1672 = vsel %vm1556, %v1632, 0.0
        %v1673 = vrot.slane %v1672, 4
        %v1674 = vadd.f32 %v1672, %v1673
        %v1675 = vrot.slane %v1674, 2
        %v1676 = vadd.f32 %v1674, %v1675
        %v1677 = vrot.slane %v1676, 1
        %v1678 = vadd.f32 %v1676, %v1677
        %v1679 = vsel %vm1556, %v1634, 0.0
        %v1680 = vrot.slane %v1679, 4
        %v1681 = vadd.f32 %v1679, %v1680
        %v1682 = vrot.slane %v1681, 2
        %v1683 = vadd.f32 %v1681, %v1682
        %v1684 = vrot.slane %v1683, 1
        %v1685 = vadd.f32 %v1683, %v1684
        %v1686 = vsel %vm1556, %v1636, 0.0
        %v1687 = vrot.slane %v1686, 4
        %v1688 = vadd.f32 %v1686, %v1687
        %v1689 = vrot.slane %v1688, 2
        %v1690 = vadd.f32 %v1688, %v1689
        %v1691 = vrot.slane %v1690, 1
        %v1692 = vadd.f32 %v1690, %v1691
        %v1693 = vrcp.pop %v1643
        %v1694 = vrcp.pop %v1650
        %v1695 = vrcp.pop %v1657
        %v1696 = vrcp.pop %v1664
        %v1697 = vrcp.pop %v1671
        %v1698 = vrcp.pop %v1678
        %v1699 = vrcp.pop %v1685
        %v1700 = vrcp.pop %v1692
        %v1701 = vmul.f32 %v1622, %v1693
        %v1702 = vmul.f32 %v1624, %v1694
        %v1703 = vmul.f32 %v1626, %v1695
        %v1704 = vmul.f32 %v1628, %v1696
        %v1705 = vmul.f32 %v1630, %v1697
        %v1706 = vmul.f32 %v1632, %v1698
        %v1707 = vmul.f32 %v1634, %v1699
        %v1708 = vmul.f32 %v1636, %v1700
        %v1709 = vld [vmem:[%s5] sm:$0xf]
        %v1718 = vcombine.low %v1701, %v1702
        %v1719 = vcombine.low %v1703, %v1704
        %v1721 = vunpack.c.l.s4 1983009808
        %v1722 = vunpack.c.0.s8 %v1721
        %v1723 = vlaneseq
        %v1724 = vshrl.u32 %v1723, 7
        %v1725 = vsub.s32 %v1722, %v1724
        %v1726 = vrot.slane %v1718, %v1725
        %v1728 = vunpack.c.l.s4 1983009808
        %v1729 = vunpack.c.0.s8 %v1728
        %v1730 = vlaneseq
        %v1731 = vshrl.u32 %v1730, 7
        %v1732 = vsub.s32 %v1729, %v1731
        %v1733 = vrot.slane %v1719, %v1732
        %v1734 = vcombine.low %v1726, %v1733
        %v1735 = vcombine.low %v1705, %v1706
        %v1736 = vcombine.low %v1707, %v1708
        %v1738 = vunpack.c.l.s4 1983009808
        %v1739 = vunpack.c.0.s8 %v1738
        %v1740 = vlaneseq
        %v1741 = vshrl.u32 %v1740, 7
        %v1742 = vsub.s32 %v1739, %v1741
        %v1743 = vrot.slane %v1735, %v1742
        %v1745 = vunpack.c.l.s4 1983009808
        %v1746 = vunpack.c.0.s8 %v1745
        %v1747 = vlaneseq
        %v1748 = vshrl.u32 %v1747, 7
        %v1749 = vsub.s32 %v1746, %v1748
        %v1750 = vrot.slane %v1736, %v1749
        %v1751 = vcombine.low %v1743, %v1750
        %vm1752 = vcmask 31744
        %v1753 = vsel %vm1752, %v1734, 0
        %v1755 = vsel %vm1752, %v1751, 0
        %vm1757 = vcmask 1043456
        %v1759 = vsel %vm1757, %v1709, 0
        %1761 = vmatprep.subr.mxu0 0.0
        %1762 = vmatpush1.msra.mxu0 0.0
        %1763 = vmatprep.subr.mxu0 0.0
        %1764 = vmatpush1.msra.mxu0 0.0
        %1765 = vmatprep.subr.mxu0 0.0
        %1766 = vmatpush1.msra.mxu0 0.0
        %1767 = vmatprep.subr.mxu0 0.0
        %1768 = vmatpush1.msra.mxu0 0.0
        %1769 = vmatprep.subr.mxu0 0.0
        %1770 = vmatpush1.msra.mxu0 0.0
        %1771 = vmatprep.subr.mxu0 0.0
        %1772 = vmatpush1.msra.mxu0 0.0
        %1773 = vmatprep.subr.mxu0 0.0
        %1774 = vmatpush1.msra.mxu0 0.0
        %1775 = vmatprep.subr.mxu0 0.0
        %1776 = vmatpush1.msra.mxu0 0.0
        %1777 = vmatprep.subr.mxu0 0.0
        %1778 = vmatpush1.msra.mxu0 0.0
        %1779 = vmatprep.subr.mxu0 0.0
        %1780 = vmatpush1.msra.mxu0 0.0
        %1781 = vmatprep.subr.mxu0 0.0
        %1782 = vmatpush1.msra.mxu0 0.0
        %1783 = vmatprep.subr.mxu0 0.0
        %1784 = vmatpush1.msra.mxu0 0.0
        %1785 = vmatprep.subr.mxu0 0.0
        %1786 = vmatpush1.msra.mxu0 0.0
        %1787 = vmatprep.subr.mxu0 0.0
        %1788 = vmatpush1.msra.mxu0 0.0
        %1789 = vmatprep.subr.mxu0 0.0
        %1790 = vmatpush1.msra.mxu0 0.0
        %1791 = vmatprep.subr.mxu0 0.0
        %1792 = vmatpush1.msra.mxu0 %v1759
        %1793 = vmatprep.subr.mxu0 0.0
        %1794 = vmatpush2.msra.mxu0 0.0
        %1795 = vmatprep.subr.mxu0 0.0
        %1796 = vmatpush2.msra.mxu0 0.0
        %1797 = vmatprep.subr.mxu0 0.0
        %1798 = vmatpush2.msra.mxu0 0.0
        %1799 = vmatprep.subr.mxu0 0.0
        %1800 = vmatpush2.msra.mxu0 0.0
        %1801 = vmatprep.subr.mxu0 0.0
        %1802 = vmatpush2.msra.mxu0 0.0
        %1803 = vmatprep.subr.mxu0 0.0
        %1804 = vmatpush2.msra.mxu0 0.0
        %1805 = vmatprep.subr.mxu0 0.0
        %1806 = vmatpush2.msra.mxu0 0.0
        %1807 = vmatprep.subr.mxu0 0.0
        %1808 = vmatpush2.msra.mxu0 0.0
        %1809 = vmatprep.subr.mxu0 0.0
        %1810 = vmatpush2.msra.mxu0 0.0
        %1811 = vmatprep.subr.mxu0 0.0
        %1812 = vmatpush2.msra.mxu0 0.0
        %1813 = vmatprep.subr.mxu0 0.0
        %1814 = vmatpush2.msra.mxu0 0.0
        %1815 = vmatprep.subr.mxu0 0.0
        %1816 = vmatpush2.msra.mxu0 0.0
        %1817 = vmatprep.subr.mxu0 0.0
        %1818 = vmatpush2.msra.mxu0 0.0
        %1819 = vmatprep.subr.mxu0 0.0
        %1820 = vmatpush2.msra.mxu0 0.0
        %1821 = vmatprep.subr.mxu0 0.0
        %1822 = vmatpush2.msra.mxu0 0.0
        %1823 = vmatprep.subr.mxu0 0.0
        %1824 = vmatpush2.msra.mxu0 0.0
        %1825 = vmatprep.mubr.f32.mxu0 0.0
        %1826 = vmatmul.mubr.f32.gmra.mxu0 %v1753
        %v1827 = vpop.f32.mrf.mxu0
        %v1828 = vadd.f32 0.0, %v1827
        %v1829 = vpop.f32.mrf.mxu0
        %1830 = vmatprep.mubr.f32.mxu0 0.0
        %1831 = vmatmul.mubr.f32.gmra.mxu0 %v1755
        %v1832 = vpop.f32.mrf.mxu0
        %v1833 = vadd.f32 0.0, %v1832
        %v1834 = vpop.f32.mrf.mxu0
        %1835 = vdwg.mxu0
        %v1838 = vcombine.high %v1828, %v1828
        %v1840 = vunpack.c.l.s4 1983009808
        %v1841 = vunpack.c.0.s8 %v1840
        %v1842 = vlaneseq
        %v1843 = vshrl.u32 %v1842, 7
        %v1844 = vsub.s32 %v1841, %v1843
        %v1845 = vrot.slane %v1828, %v1844
        %v1847 = vunpack.c.l.s4 1983009808
        %v1848 = vunpack.c.0.s8 %v1847
        %v1849 = vlaneseq
        %v1850 = vshrl.u32 %v1849, 7
        %v1851 = vsub.s32 %v1848, %v1850
        %v1852 = vrot.slane %v1838, %v1851
        %v1853 = vcombine.high %v1845, %v1845
        %v1854 = vcombine.high %v1852, %v1852
        %v1855 = vcombine.high %v1833, %v1833
        %v1857 = vunpack.c.l.s4 1983009808
        %v1858 = vunpack.c.0.s8 %v1857
        %v1859 = vlaneseq
        %v1860 = vshrl.u32 %v1859, 7
        %v1861 = vsub.s32 %v1858, %v1860
        %v1862 = vrot.slane %v1833, %v1861
        %v1864 = vunpack.c.l.s4 1983009808
        %v1865 = vunpack.c.0.s8 %v1864
        %v1866 = vlaneseq
        %v1867 = vshrl.u32 %v1866, 7
        %v1868 = vsub.s32 %v1865, %v1867
        %v1869 = vrot.slane %v1855, %v1868
        %v1870 = vcombine.high %v1862, %v1862
        %v1871 = vcombine.high %v1869, %v1869
        %v1881 = vcombine.high %v1252, %v1252
        %v1883 = vunpack.c.l.s4 1983009808
        %v1884 = vunpack.c.0.s8 %v1883
        %v1885 = vlaneseq
        %v1886 = vshrl.u32 %v1885, 7
        %v1887 = vsub.s32 %v1884, %v1886
        %v1888 = vrot.slane %v1252, %v1887
        %v1890 = vunpack.c.l.s4 1983009808
        %v1891 = vunpack.c.0.s8 %v1890
        %v1892 = vlaneseq
        %v1893 = vshrl.u32 %v1892, 7
        %v1894 = vsub.s32 %v1891, %v1893
        %v1895 = vrot.slane %v1881, %v1894
        %v1896 = vcombine.high %v1888, %v1888
        %v1897 = vcombine.high %v1895, %v1895
        %v1902 = vmul.f32 %v1845, %v1888
        %v1903 = vmul.f32 %v1853, %v1888
        %v1904 = vmul.f32 %v1852, %v1896
        %v1905 = vmul.f32 %v1854, %v1896
        %v1906 = vmul.f32 %v1862, %v1895
        %v1907 = vmul.f32 %v1870, %v1895
        %v1908 = vmul.f32 %v1869, %v1897
        %v1909 = vmul.f32 %v1871, %v1897
        %vm1910 = vcmask 1041408
        %v1911 = vsel %vm1910, %v1902, 0.0
        %v1912 = vrot.slane %v1911, 4
        %v1913 = vadd.f32 %v1911, %v1912
        %v1914 = vrot.slane %v1913, 2
        %v1915 = vadd.f32 %v1913, %v1914
        %v1916 = vrot.slane %v1915, 1
        %v1917 = vadd.f32 %v1915, %v1916
        %v1918 = vsel %vm1910, %v1903, 0.0
        %v1919 = vrot.slane %v1918, 4
        %v1920 = vadd.f32 %v1918, %v1919
        %v1921 = vrot.slane %v1920, 2
        %v1922 = vadd.f32 %v1920, %v1921
        %v1923 = vrot.slane %v1922, 1
        %v1924 = vadd.f32 %v1922, %v1923
        %v1925 = vsel %vm1910, %v1904, 0.0
        %v1926 = vrot.slane %v1925, 4
        %v1927 = vadd.f32 %v1925, %v1926
        %v1928 = vrot.slane %v1927, 2
        %v1929 = vadd.f32 %v1927, %v1928
        %v1930 = vrot.slane %v1929, 1
        %v1931 = vadd.f32 %v1929, %v1930
        %v1932 = vsel %vm1910, %v1905, 0.0
        %v1933 = vrot.slane %v1932, 4
        %v1934 = vadd.f32 %v1932, %v1933
        %v1935 = vrot.slane %v1934, 2
        %v1936 = vadd.f32 %v1934, %v1935
        %v1937 = vrot.slane %v1936, 1
        %v1938 = vadd.f32 %v1936, %v1937
        %v1939 = vsel %vm1910, %v1906, 0.0
        %v1940 = vrot.slane %v1939, 4
        %v1941 = vadd.f32 %v1939, %v1940
        %v1942 = vrot.slane %v1941, 2
        %v1943 = vadd.f32 %v1941, %v1942
        %v1944 = vrot.slane %v1943, 1
        %v1945 = vadd.f32 %v1943, %v1944
        %v1946 = vsel %vm1910, %v1907, 0.0
        %v1947 = vrot.slane %v1946, 4
        %v1948 = vadd.f32 %v1946, %v1947
        %v1949 = vrot.slane %v1948, 2
        %v1950 = vadd.f32 %v1948, %v1949
        %v1951 = vrot.slane %v1950, 1
        %v1952 = vadd.f32 %v1950, %v1951
        %v1953 = vsel %vm1910, %v1908, 0.0
        %v1954 = vrot.slane %v1953, 4
        %v1955 = vadd.f32 %v1953, %v1954
        %v1956 = vrot.slane %v1955, 2
        %v1957 = vadd.f32 %v1955, %v1956
        %v1958 = vrot.slane %v1957, 1
        %v1959 = vadd.f32 %v1957, %v1958
        %v1960 = vsel %vm1910, %v1909, 0.0
        %v1961 = vrot.slane %v1960, 4
        %v1962 = vadd.f32 %v1960, %v1961
        %v1963 = vrot.slane %v1962, 2
        %v1964 = vadd.f32 %v1962, %v1963
        %v1965 = vrot.slane %v1964, 1
        %v1966 = vadd.f32 %v1964, %v1965
        %v1967 = vpack.c.bf16 %v1917, %v1917
        %v1968 = vpack.c.bf16 %v1924, %v1924
        %v1969 = vpack.c.bf16 %v1931, %v1931
        %v1970 = vpack.c.bf16 %v1938, %v1938
        %v1971 = vpack.c.bf16 %v1945, %v1945
        %v1972 = vpack.c.bf16 %v1952, %v1952
        %v1973 = vpack.c.bf16 %v1959, %v1959
        %v1974 = vpack.c.bf16 %v1966, %v1966
        %v1975 = vld [vmem:[%s830] sm:$0xf]
        %v1976 = vld [vmem:[%s830 + $0x4] sm:$0xf]
        %v1977 = vld [vmem:[%s830 + $0x8] sm:$0xf]
        %v1978 = vld [vmem:[%s830 + $0xc] sm:$0xf]
        %v1979 = vld [vmem:[%s830 + $0x10] sm:$0xf]
        %v1980 = vld [vmem:[%s830 + $0x14] sm:$0xf]
        %v1981 = vld [vmem:[%s830 + $0x18] sm:$0xf]
        %v1982 = vld [vmem:[%s830 + $0x1c] sm:$0xf]
        %v1983 = vld [vmem:[%s830 + $0x20] sm:$0xf]
        %v1984 = vld [vmem:[%s830 + $0x24] sm:$0xf]
        %v1985 = vld [vmem:[%s830 + $0x28] sm:$0xf]
        %v1986 = vld [vmem:[%s830 + $0x2c] sm:$0xf]
        %v1987 = vld [vmem:[%s830 + $0x30] sm:$0xf]
        %v1988 = vld [vmem:[%s830 + $0x34] sm:$0xf]
        %v1989 = vld [vmem:[%s830 + $0x38] sm:$0xf]
        %v1990 = vld [vmem:[%s830 + $0x3c] sm:$0xf]
        %v1991 = vld [vmem:[%s833] sm:$0x1]
        %v1993 = vlaneseq
        %v1994 = vshrl.u32 %v1993, 7
        %v1995 = vsub.s32 0, %v1994
        %v1996 = vrot.slane %v1991, %v1995
        %v2006 = vunpack.c.l.b16 %v1967
        %v2007 = vunpack.c.l.b16 %v1968
        %v2008 = vunpack.c.l.b16 %v1969
        %v2009 = vunpack.c.l.b16 %v1970
        %v2010 = vunpack.c.l.b16 %v1971
        %v2011 = vunpack.c.l.b16 %v1972
        %v2012 = vunpack.c.l.b16 %v1973
        %v2013 = vunpack.c.l.b16 %v1974
        %vm2014 = vcmask 1041409
        %v2015 = vsel %vm2014, %v2007, %v2006
        %vm2016 = vcmask 1042434
        %v2017 = vsel %vm2016, %v2008, %v2015
        %vm2018 = vcmask 1043459
        %v2019 = vsel %vm2018, %v2009, %v2017
        %vm2020 = vcmask 1044484
        %v2021 = vsel %vm2020, %v2010, %v2019
        %vm2022 = vcmask 1045509
        %v2023 = vsel %vm2022, %v2011, %v2021
        %vm2024 = vcmask 1046534
        %v2025 = vsel %vm2024, %v2012, %v2023
        %vm2026 = vcmask 1047559
        %v2027 = vsel %vm2026, %v2013, %v2025
        %v2028 = vpack.c.b16 %v2027, %v2027
        %v2046 = vunpack.c.l.b16 %v1975
        %v2047 = vunpack.c.l.b16 %v1976
        %v2048 = vunpack.c.l.b16 %v1977
        %v2049 = vunpack.c.l.b16 %v1978
        %v2050 = vunpack.c.l.b16 %v1979
        %v2051 = vunpack.c.l.b16 %v1980
        %v2052 = vunpack.c.l.b16 %v1981
        %v2053 = vunpack.c.l.b16 %v1982
        %v2054 = vunpack.c.l.b16 %v1983
        %v2055 = vunpack.c.l.b16 %v1984
        %v2056 = vunpack.c.l.b16 %v1985
        %v2057 = vunpack.c.l.b16 %v1986
        %v2058 = vunpack.c.l.b16 %v1987
        %v2059 = vunpack.c.l.b16 %v1988
        %v2060 = vunpack.c.l.b16 %v1989
        %v2061 = vunpack.c.l.b16 %v1990
        %v2062 = vpack.c.b16 %v2047, %v2046
        %v2063 = vpack.c.b16 %v2049, %v2048
        %v2064 = vpack.c.b16 %v2051, %v2050
        %v2065 = vpack.c.b16 %v2053, %v2052
        %v2066 = vpack.c.b16 %v2055, %v2054
        %v2067 = vpack.c.b16 %v2057, %v2056
        %v2068 = vpack.c.b16 %v2059, %v2058
        %v2069 = vpack.c.b16 %v2061, %v2060
        %2078 = vmatprep.subr.bf16.mxu0 0
        %2079 = vmatpush1.bf16.msra.mxu0 %v2069
        %2080 = vmatprep.subr.bf16.mxu0 0
        %2081 = vmatpush1.bf16.msra.mxu0 %v2068
        %2082 = vmatprep.subr.bf16.mxu0 0
        %2083 = vmatpush1.bf16.msra.mxu0 %v2067
        %2084 = vmatprep.subr.bf16.mxu0 0
        %2085 = vmatpush1.bf16.msra.mxu0 %v2066
        %2086 = vmatprep.subr.bf16.mxu0 0
        %2087 = vmatpush1.bf16.msra.mxu0 %v2065
        %2088 = vmatprep.subr.bf16.mxu0 0
        %2089 = vmatpush1.bf16.msra.mxu0 %v2064
        %2090 = vmatprep.subr.bf16.mxu0 0
        %2091 = vmatpush1.bf16.msra.mxu0 %v2063
        %2092 = vmatprep.subr.bf16.mxu0 0
        %2093 = vmatpush1.bf16.msra.mxu0 %v2062
        %2094 = vmatprep.subr.bf16.mxu0 0
        %2095 = vmatpush2.bf16.msra.mxu0 0
        %2096 = vmatprep.subr.bf16.mxu0 0
        %2097 = vmatpush2.bf16.msra.mxu0 0
        %2098 = vmatprep.subr.bf16.mxu0 0
        %2099 = vmatpush2.bf16.msra.mxu0 0
        %2100 = vmatprep.subr.bf16.mxu0 0
        %2101 = vmatpush2.bf16.msra.mxu0 0
        %2102 = vmatprep.subr.bf16.mxu0 0
        %2103 = vmatpush2.bf16.msra.mxu0 0
        %2104 = vmatprep.subr.bf16.mxu0 0
        %2105 = vmatpush2.bf16.msra.mxu0 0
        %2106 = vmatprep.subr.bf16.mxu0 0
        %2107 = vmatpush2.bf16.msra.mxu0 0
        %2108 = vmatprep.subr.bf16.mxu0 0
        %2109 = vmatpush2.bf16.msra.mxu0 0
        %2110 = vmatprep.mubr.bf16.mxu0 0
        %2111 = vmatmul.mubr.bf16.gmra.mxu0 %v2028
        %v2112 = vpop.f32.mrf.mxu0
        %v2113 = vadd.f32 %v1996, %v2112
        %v2114 = vpop.f32.mrf.mxu0
        %v2115 = vpop.f32.mrf.mxu0
        %v2116 = vpop.f32.mrf.mxu0
        %2117 = vdwg.mxu0
        %v2118 = vadd.f32 %v2113, %v997
        %v2119 = vld [vmem:[%s836] sm:$0x1]
        %v2120 = vld [vmem:[%s839] sm:$0x1]
        %2121 = vadd.xlane.f32.xlu0 %v2118
        %v2122 = vpop.xlane.xlu0 %2121
        %v2123 = vrcp.pop 128.0
        %v2124 = vmul.f32 %v2122, %v2123
        %v2125 = vsub.f32 %v2118, %v2124
        %v2126 = vmul.f32 %v2125, %v2125
        %2127 = vadd.xlane.f32.xlu0 %v2126
        %v2128 = vpop.xlane.xlu0 %2127
        %v2129 = vmul.f32 %v2128, %v2123
        %v2130 = vadd.f32 %v2129, 1e-05
        %v2131 = vrsqrt.pop %v2130
        %v2132 = vmul.f32 %v2125, %v2131
        %v2134 = vlaneseq
        %v2135 = vshrl.u32 %v2134, 7
        %v2136 = vsub.s32 0, %v2135
        %v2137 = vrot.slane %v2119, %v2136
        %v2139 = vmul.f32 %v2132, %v2137
        %v2141 = vlaneseq
        %v2142 = vshrl.u32 %v2141, 7
        %v2143 = vsub.s32 0, %v2142
        %v2144 = vrot.slane %v2120, %v2143
        %v2146 = vadd.f32 %v2139, %v2144
        %v2147 = vpack.c.bf16 %v2146, %v2146
        %v2148 = vld [vmem:[%s703] sm:$0xff]
        %v2149 = vld [vmem:[%s703 + $0x8] sm:$0xff]
        %v2150 = vld [vmem:[%s703 + $0x10] sm:$0xff]
        %v2151 = vld [vmem:[%s703 + $0x18] sm:$0xff]
        %v2152 = vld [vmem:[%s703 + $0x20] sm:$0xff]
        %v2153 = vld [vmem:[%s703 + $0x28] sm:$0xff]
        %v2154 = vld [vmem:[%s703 + $0x30] sm:$0xff]
        %v2155 = vld [vmem:[%s703 + $0x38] sm:$0xff]
        %v2156 = vld [vmem:[%s703 + $0x40] sm:$0xff]
        %v2157 = vld [vmem:[%s703 + $0x48] sm:$0xff]
        %v2158 = vld [vmem:[%s703 + $0x50] sm:$0xff]
        %v2159 = vld [vmem:[%s703 + $0x58] sm:$0xff]
        %v2160 = vld [vmem:[%s703 + $0x60] sm:$0xff]
        %v2161 = vld [vmem:[%s703 + $0x68] sm:$0xff]
        %v2162 = vld [vmem:[%s703 + $0x70] sm:$0xff]
        %v2163 = vld [vmem:[%s703 + $0x78] sm:$0xff]
        %v2164 = vld [vmem:[%s843] sm:$0x3]
        %v2166 = vlaneseq
        %v2167 = vshrl.u32 %v2166, 7
        %v2168 = vsub.s32 0, %v2167
        %v2169 = vrot.slane %v2164, %v2168
        %v2170 = vlaneseq
        %v2171 = vshrl.u32 %v2170, 7
        %v2172 = vsub.s32 1, %v2171
        %v2173 = vrot.slane %v2164, %v2172
        %v2192 = vunpack.c.l.b16 %v2148
        %v2193 = vunpack.c.h.b16 %v2148
        %v2194 = vunpack.c.l.b16 %v2149
        %v2195 = vunpack.c.h.b16 %v2149
        %v2196 = vunpack.c.l.b16 %v2150
        %v2197 = vunpack.c.h.b16 %v2150
        %v2198 = vunpack.c.l.b16 %v2151
        %v2199 = vunpack.c.h.b16 %v2151
        %v2200 = vunpack.c.l.b16 %v2152
        %v2201 = vunpack.c.h.b16 %v2152
        %v2202 = vunpack.c.l.b16 %v2153
        %v2203 = vunpack.c.h.b16 %v2153
        %v2204 = vunpack.c.l.b16 %v2154
        %v2205 = vunpack.c.h.b16 %v2154
        %v2206 = vunpack.c.l.b16 %v2155
        %v2207 = vunpack.c.h.b16 %v2155
        %v2208 = vunpack.c.l.b16 %v2156
        %v2209 = vunpack.c.h.b16 %v2156
        %v2210 = vunpack.c.l.b16 %v2157
        %v2211 = vunpack.c.h.b16 %v2157
        %v2212 = vunpack.c.l.b16 %v2158
        %v2213 = vunpack.c.h.b16 %v2158
        %v2214 = vunpack.c.l.b16 %v2159
        %v2215 = vunpack.c.h.b16 %v2159
        %v2216 = vunpack.c.l.b16 %v2160
        %v2217 = vunpack.c.h.b16 %v2160
        %v2218 = vunpack.c.l.b16 %v2161
        %v2219 = vunpack.c.h.b16 %v2161
        %v2220 = vunpack.c.l.b16 %v2162
        %v2221 = vunpack.c.h.b16 %v2162
        %v2222 = vunpack.c.l.b16 %v2163
        %v2223 = vunpack.c.h.b16 %v2163
        %v2224 = vpack.c.b16 %v2194, %v2192
        %v2225 = vpack.c.b16 %v2195, %v2193
        %v2226 = vpack.c.b16 %v2198, %v2196
        %v2227 = vpack.c.b16 %v2199, %v2197
        %v2228 = vpack.c.b16 %v2202, %v2200
        %v2229 = vpack.c.b16 %v2203, %v2201
        %v2230 = vpack.c.b16 %v2206, %v2204
        %v2231 = vpack.c.b16 %v2207, %v2205
        %v2232 = vpack.c.b16 %v2210, %v2208
        %v2233 = vpack.c.b16 %v2211, %v2209
        %v2234 = vpack.c.b16 %v2214, %v2212
        %v2235 = vpack.c.b16 %v2215, %v2213
        %v2236 = vpack.c.b16 %v2218, %v2216
        %v2237 = vpack.c.b16 %v2219, %v2217
        %v2238 = vpack.c.b16 %v2222, %v2220
        %v2239 = vpack.c.b16 %v2223, %v2221
        %2256 = vmatprep.subr.bf16.mxu0 %v2239
        %2257 = vmatpush1.bf16.msra.mxu0 %v2238
        %2258 = vmatprep.subr.bf16.mxu0 %v2237
        %2259 = vmatpush1.bf16.msra.mxu0 %v2236
        %2260 = vmatprep.subr.bf16.mxu0 %v2235
        %2261 = vmatpush1.bf16.msra.mxu0 %v2234
        %2262 = vmatprep.subr.bf16.mxu0 %v2233
        %2263 = vmatpush1.bf16.msra.mxu0 %v2232
        %2264 = vmatprep.subr.bf16.mxu0 %v2231
        %2265 = vmatpush1.bf16.msra.mxu0 %v2230
        %2266 = vmatprep.subr.bf16.mxu0 %v2229
        %2267 = vmatpush1.bf16.msra.mxu0 %v2228
        %2268 = vmatprep.subr.bf16.mxu0 %v2227
        %2269 = vmatpush1.bf16.msra.mxu0 %v2226
        %2270 = vmatprep.subr.bf16.mxu0 %v2225
        %2271 = vmatpush1.bf16.msra.mxu0 %v2224
        %2272 = vmatprep.subr.bf16.mxu0 0
        %2273 = vmatpush2.bf16.msra.mxu0 0
        %2274 = vmatprep.subr.bf16.mxu0 0
        %2275 = vmatpush2.bf16.msra.mxu0 0
        %2276 = vmatprep.subr.bf16.mxu0 0
        %2277 = vmatpush2.bf16.msra.mxu0 0
        %2278 = vmatprep.subr.bf16.mxu0 0
        %2279 = vmatpush2.bf16.msra.mxu0 0
        %2280 = vmatprep.subr.bf16.mxu0 0
        %2281 = vmatpush2.bf16.msra.mxu0 0
        %2282 = vmatprep.subr.bf16.mxu0 0
        %2283 = vmatpush2.bf16.msra.mxu0 0
        %2284 = vmatprep.subr.bf16.mxu0 0
        %2285 = vmatpush2.bf16.msra.mxu0 0
        %2286 = vmatprep.subr.bf16.mxu0 0
        %2287 = vmatpush2.bf16.msra.mxu0 0
        %2288 = vmatprep.mubr.bf16.mxu0 0
        %2289 = vmatmul.mubr.bf16.gmra.mxu0 %v2147
        %v2290 = vpop.f32.mrf.mxu0
        %v2291 = vadd.f32 %v2169, %v2290
        %v2292 = vpop.f32.mrf.mxu0
        %v2293 = vadd.f32 %v2173, %v2292
        %v2294 = vpop.f32.mrf.mxu0
        %v2295 = vpop.f32.mrf.mxu0
        %2296 = vdwg.mxu0
        %v2297 = vmax.f32 %v2291, 0.0
        %v2298 = vmax.f32 %v2293, 0.0
        %v2299 = vpack.c.bf16 %v2297, %v2297
        %v2300 = vpack.c.bf16 %v2298, %v2298
        %v2301 = vld [vmem:[%s712] sm:$0xf]
        %v2302 = vld [vmem:[%s712 + $0x4] sm:$0xf]
        %v2303 = vld [vmem:[%s712 + $0x8] sm:$0xf]
        %v2304 = vld [vmem:[%s712 + $0xc] sm:$0xf]
        %v2305 = vld [vmem:[%s712 + $0x10] sm:$0xf]
        %v2306 = vld [vmem:[%s712 + $0x14] sm:$0xf]
        %v2307 = vld [vmem:[%s712 + $0x18] sm:$0xf]
        %v2308 = vld [vmem:[%s712 + $0x1c] sm:$0xf]
        %v2309 = vld [vmem:[%s712 + $0x20] sm:$0xf]
        %v2310 = vld [vmem:[%s712 + $0x24] sm:$0xf]
        %v2311 = vld [vmem:[%s712 + $0x28] sm:$0xf]
        %v2312 = vld [vmem:[%s712 + $0x2c] sm:$0xf]
        %v2313 = vld [vmem:[%s712 + $0x30] sm:$0xf]
        %v2314 = vld [vmem:[%s712 + $0x34] sm:$0xf]
        %v2315 = vld [vmem:[%s712 + $0x38] sm:$0xf]
        %v2316 = vld [vmem:[%s712 + $0x3c] sm:$0xf]
        %v2317 = vld [vmem:[%s712 + $0x40] sm:$0xf]
        %v2318 = vld [vmem:[%s712 + $0x44] sm:$0xf]
        %v2319 = vld [vmem:[%s712 + $0x48] sm:$0xf]
        %v2320 = vld [vmem:[%s712 + $0x4c] sm:$0xf]
        %v2321 = vld [vmem:[%s712 + $0x50] sm:$0xf]
        %v2322 = vld [vmem:[%s712 + $0x54] sm:$0xf]
        %v2323 = vld [vmem:[%s712 + $0x58] sm:$0xf]
        %v2324 = vld [vmem:[%s712 + $0x5c] sm:$0xf]
        %v2325 = vld [vmem:[%s712 + $0x60] sm:$0xf]
        %v2326 = vld [vmem:[%s712 + $0x64] sm:$0xf]
        %v2327 = vld [vmem:[%s712 + $0x68] sm:$0xf]
        %v2328 = vld [vmem:[%s712 + $0x6c] sm:$0xf]
        %v2329 = vld [vmem:[%s712 + $0x70] sm:$0xf]
        %v2330 = vld [vmem:[%s712 + $0x74] sm:$0xf]
        %v2331 = vld [vmem:[%s712 + $0x78] sm:$0xf]
        %v2332 = vld [vmem:[%s712 + $0x7c] sm:$0xf]
        %v2333 = vld [vmem:[%s846] sm:$0x1]
        %v2335 = vlaneseq
        %v2336 = vshrl.u32 %v2335, 7
        %v2337 = vsub.s32 0, %v2336
        %v2338 = vrot.slane %v2333, %v2337
        %v2372 = vunpack.c.l.b16 %v2301
        %v2373 = vunpack.c.l.b16 %v2302
        %v2374 = vunpack.c.l.b16 %v2303
        %v2375 = vunpack.c.l.b16 %v2304
        %v2376 = vunpack.c.l.b16 %v2305
        %v2377 = vunpack.c.l.b16 %v2306
        %v2378 = vunpack.c.l.b16 %v2307
        %v2379 = vunpack.c.l.b16 %v2308
        %v2380 = vunpack.c.l.b16 %v2309
        %v2381 = vunpack.c.l.b16 %v2310
        %v2382 = vunpack.c.l.b16 %v2311
        %v2383 = vunpack.c.l.b16 %v2312
        %v2384 = vunpack.c.l.b16 %v2313
        %v2385 = vunpack.c.l.b16 %v2314
        %v2386 = vunpack.c.l.b16 %v2315
        %v2387 = vunpack.c.l.b16 %v2316
        %v2388 = vunpack.c.l.b16 %v2317
        %v2389 = vunpack.c.l.b16 %v2318
        %v2390 = vunpack.c.l.b16 %v2319
        %v2391 = vunpack.c.l.b16 %v2320
        %v2392 = vunpack.c.l.b16 %v2321
        %v2393 = vunpack.c.l.b16 %v2322
        %v2394 = vunpack.c.l.b16 %v2323
        %v2395 = vunpack.c.l.b16 %v2324
        %v2396 = vunpack.c.l.b16 %v2325
        %v2397 = vunpack.c.l.b16 %v2326
        %v2398 = vunpack.c.l.b16 %v2327
        %v2399 = vunpack.c.l.b16 %v2328
        %v2400 = vunpack.c.l.b16 %v2329
        %v2401 = vunpack.c.l.b16 %v2330
        %v2402 = vunpack.c.l.b16 %v2331
        %v2403 = vunpack.c.l.b16 %v2332
        %v2404 = vpack.c.b16 %v2373, %v2372
        %v2405 = vpack.c.b16 %v2375, %v2374
        %v2406 = vpack.c.b16 %v2377, %v2376
        %v2407 = vpack.c.b16 %v2379, %v2378
        %v2408 = vpack.c.b16 %v2381, %v2380
        %v2409 = vpack.c.b16 %v2383, %v2382
        %v2410 = vpack.c.b16 %v2385, %v2384
        %v2411 = vpack.c.b16 %v2387, %v2386
        %v2412 = vpack.c.b16 %v2389, %v2388
        %v2413 = vpack.c.b16 %v2391, %v2390
        %v2414 = vpack.c.b16 %v2393, %v2392
        %v2415 = vpack.c.b16 %v2395, %v2394
        %v2416 = vpack.c.b16 %v2397, %v2396
        %v2417 = vpack.c.b16 %v2399, %v2398
        %v2418 = vpack.c.b16 %v2401, %v2400
        %v2419 = vpack.c.b16 %v2403, %v2402
        %2436 = vmatprep.subr.bf16.mxu0 0
        %2437 = vmatpush1.bf16.msra.mxu0 %v2411
        %2438 = vmatprep.subr.bf16.mxu0 0
        %2439 = vmatpush1.bf16.msra.mxu0 %v2410
        %2440 = vmatprep.subr.bf16.mxu0 0
        %2441 = vmatpush1.bf16.msra.mxu0 %v2409
        %2442 = vmatprep.subr.bf16.mxu0 0
        %2443 = vmatpush1.bf16.msra.mxu0 %v2408
        %2444 = vmatprep.subr.bf16.mxu0 0
        %2445 = vmatpush1.bf16.msra.mxu0 %v2407
        %2446 = vmatprep.subr.bf16.mxu0 0
        %2447 = vmatpush1.bf16.msra.mxu0 %v2406
        %2448 = vmatprep.subr.bf16.mxu0 0
        %2449 = vmatpush1.bf16.msra.mxu0 %v2405
        %2450 = vmatprep.subr.bf16.mxu0 0
        %2451 = vmatpush1.bf16.msra.mxu0 %v2404
        %2452 = vmatprep.subr.bf16.mxu0 0
        %2453 = vmatpush2.bf16.msra.mxu0 %v2419
        %2454 = vmatprep.subr.bf16.mxu0 0
        %2455 = vmatpush2.bf16.msra.mxu0 %v2418
        %2456 = vmatprep.subr.bf16.mxu0 0
        %2457 = vmatpush2.bf16.msra.mxu0 %v2417
        %2458 = vmatprep.subr.bf16.mxu0 0
        %2459 = vmatpush2.bf16.msra.mxu0 %v2416
        %2460 = vmatprep.subr.bf16.mxu0 0
        %2461 = vmatpush2.bf16.msra.mxu0 %v2415
        %2462 = vmatprep.subr.bf16.mxu0 0
        %2463 = vmatpush2.bf16.msra.mxu0 %v2414
        %2464 = vmatprep.subr.bf16.mxu0 0
        %2465 = vmatpush2.bf16.msra.mxu0 %v2413
        %2466 = vmatprep.subr.bf16.mxu0 0
        %2467 = vmatpush2.bf16.msra.mxu0 %v2412
        %2468 = vmatprep.mubr.bf16.mxu0 %v2300
        %2469 = vmatmul.mubr.bf16.gmra.mxu0 %v2299
        %v2470 = vpop.f32.mrf.mxu0
        %v2471 = vadd.f32 %v2338, %v2470
        %v2472 = vpop.f32.mrf.mxu0
        %v2473 = vpop.f32.mrf.mxu0
        %v2474 = vpop.f32.mrf.mxu0
        %2475 = vdwg.mxu0
        %v2476 = vadd.f32 %v2471, %v2146
        %v2477 = vld [vmem:[%s849] sm:$0x1]
        %v2478 = vld [vmem:[%s852] sm:$0x1]
        %2479 = vadd.xlane.f32.xlu0 %v2476
        %v2480 = vpop.xlane.xlu0 %2479
        %v2481 = vmul.f32 %v2480, %v2123
        %v2482 = vsub.f32 %v2476, %v2481
        %v2483 = vmul.f32 %v2482, %v2482
        %2484 = vadd.xlane.f32.xlu0 %v2483
        %v2485 = vpop.xlane.xlu0 %2484
        %v2486 = vmul.f32 %v2485, %v2123
        %v2487 = vadd.f32 %v2486, 1e-05
        %v2488 = vrsqrt.pop %v2487
        %v2489 = vmul.f32 %v2482, %v2488
        %v2491 = vlaneseq
        %v2492 = vshrl.u32 %v2491, 7
        %v2493 = vsub.s32 0, %v2492
        %v2494 = vrot.slane %v2477, %v2493
        %v2496 = vmul.f32 %v2489, %v2494
        %v2498 = vlaneseq
        %v2499 = vshrl.u32 %v2498, 7
        %v2500 = vsub.s32 0, %v2499
        %v2501 = vrot.slane %v2478, %v2500
        %v2503 = vadd.f32 %v2496, %v2501
        %2504 = vst [vmem:[#allocation2] sm:$0xff] %v2503
        %p2505 = scmp.eq.s32.totalorder %s40, 1
        // Predicated region
        $region109: #{transformer_discriminator.1} parent=91 // pred_check
          %p2506 = pneg %p2505
        $region110: #{transformer_discriminator.1} parent=91 // pred_check_branch
          %2508 = sbr.rel (%p2506) target = $region112
        $region111: #{transformer_discriminator.1} parent=91 // pred_region
          %2509 = vst [vmem:[%s856] sm:$0xff] %v2503
        $region112: #{transformer_discriminator.1} parent=91 // pred_fallthru
          _
        %p2510 = scmp.lt.s32.totalorder %s39, 1
        %s2511 = scalar_select %p2510, %s39, 1
        %s2512 = smul.addr %s2511, 8
        %s2513 = scalar_lea.vmem %s18, %s2512
        // Predicated region
        $region113: #{transformer_discriminator.1} parent=91 // pred_check
          %p2514 = pneg %p513
        $region114: #{transformer_discriminator.1} parent=91 // pred_check_branch
          %2516 = sbr.rel (%p2514) target = $region116
        $region115: #{transformer_discriminator.1} parent=91 // pred_region
          _
        $region116: #{transformer_discriminator.1} parent=91 // pred_fallthru
          _
      $region92: #{transformer_discriminator.1} parent=5 // pred_fallthru
        _
      %p2517 = scmp.le.s32.totalorder 2, %s30
      // Predicated region
      $region117: #{transformer_discriminator.1} parent=5 // pred_check
        %p2518 = pneg %p2517
      $region118: #{transformer_discriminator.1} parent=5 // pred_check_branch
        %2520 = sbr.rel (%p2518) target = $region120
      $region119: #{transformer_discriminator.1} parent=5 // pred_region
        %s2521 = ssub.s32 %s30, 2
        // Predicated region
        $region121: #{transformer_discriminator.1} parent=119 // pred_check
          %p2522 = pneg %p519
        $region122: #{transformer_discriminator.1} parent=119 // pred_check_branch
          %2524 = sbr.rel (%p2522) target = $region124
        $region123: #{transformer_discriminator.1} parent=119 // pred_region
          %p2525 = scmp.lt.s32.totalorder %s41, 1
          %s2526 = scalar_select %p2525, %s41, 1
          %s2527 = smul.addr %s2526, 8
          %s2528 = scalar_lea.vmem %s18, %s2527
        $region124: #{transformer_discriminator.1} parent=119 // pred_fallthru
          _
      $region120: #{transformer_discriminator.1} parent=5 // pred_fallthru
        _
    $region6: #{transformer_discriminator.1} parent=1 // loop_footer
      %s34 = sadd.s32 1, %s30
    $region7: #{transformer_discriminator.1} parent=1 // loop_footer_branch
      %29 = sbr.rel target = $region3
    $region8: #{transformer_discriminator.1} parent=1 // loop_exit
      _
    %2529 = vsyncpa [#allocation4], 1
    %s2530 = scalar_lea.sflag [#allocation4], 1
    %2531 = vsyncpa %s2530, 1
    %2532 = vsyncpa [#allocation6], 1
    %s2533 = scalar_lea.sflag [#allocation6], 1
    %2534 = vsyncpa %s2533, 1

</llo_original>
